<compile_context>
chip_gen: v7x
topology: tpu7x:2x2x1
jax: 0.10.0
libtpu: 0.0.40
codegen_flags: <defaults>
</compile_context>

<pallas_src>
import functools

import jax
import jax.numpy as jnp
from jax.experimental import pallas as pl
from jax.experimental.pallas import tpu as pltpu

K_IN = 28 * 28       # 784
K_PAD = 896          # 7 * 128 — lane-aligned contraction dim for layer 1
HID = 512
N_OUT = 10
N_PAD = 128          # lane-dense (padded) logit width


def _round_up(x, m):
    return ((x + m - 1) // m) * m


def mlp_kernel(x_ref, w1_ref, b1_ref, w2_ref, b2_ref, w3_ref, b3_ref, o_ref):
    # Layer 1: (TB, 896) @ (896, 512) + b1, ReLU.  f32 accumulation on MXU.
    h1 = jnp.dot(x_ref[...], w1_ref[...], preferred_element_type=jnp.float32)
    h1 = jnp.maximum(h1 + b1_ref[...], 0.0)            # bias+ReLU on VPU (f32)
    # Layer 2: (TB, 512) @ (512, 512) + b2, ReLU.
    h2 = jnp.dot(h1.astype(w2_ref.dtype), w2_ref[...],
                 preferred_element_type=jnp.float32)
    h2 = jnp.maximum(h2 + b2_ref[...], 0.0)
    # Layer 3: (TB, 512) @ (512, 128) + b3  (N padded 10 -> 128, lane-dense store).
    logits = jnp.dot(h2.astype(w3_ref.dtype), w3_ref[...],
                     preferred_element_type=jnp.float32)
    o_ref[...] = (logits + b3_ref[...]).astype(o_ref.dtype)


@functools.partial(jax.jit, static_argnames=("tile_b", "compute_dtype"))
def neural_network_forward(x, params, *, tile_b=256, compute_dtype=jnp.float32):
    """x: (B, 28, 28) float32. Returns logits (B, 10) float32."""
    w1, b1, w2, b2, w3, b3 = params
    B = x.shape[0]

    # nn.Flatten() + K padding (784 -> 896) with zeros (exact: padded K
    # columns of x and rows of w1 are zero, so they contribute nothing).
    x_flat = x.reshape(B, K_IN).astype(jnp.float32)
    x_flat = jnp.pad(x_flat, ((0, 0), (0, K_PAD - K_IN)))
    w1_p = jnp.pad(w1, ((0, K_PAD - K_IN), (0, 0)))

    # N padding of the last layer (10 -> 128) with zeros; sliced off below.
    w3_p = jnp.pad(w3, ((0, 0), (0, N_PAD - N_OUT)))
    b3_p = jnp.pad(b3, ((0, 0), (0, N_PAD - N_OUT)))

    # Batch tiling: TILE_B multiple of 8 sublanes; pad B up to a tile multiple.
    tb = min(tile_b, _round_up(B, 8))
    b_pad = _round_up(B, tb)
    if b_pad != B:
        x_flat = jnp.pad(x_flat, ((0, b_pad - B), (0, 0)))

    # Optional low-precision matmul path (f32 accumulation kept in-kernel).
    if compute_dtype != jnp.float32:
        x_flat = x_flat.astype(compute_dtype)
        w1_p = w1_p.astype(compute_dtype)
        w2 = w2.astype(compute_dtype)
        w3_p = w3_p.astype(compute_dtype)

    grid = (b_pad // tb,)
    # Weights/biases: constant index_map -> VMEM-resident, no per-step DMA.
    w_spec = lambda shape: pl.BlockSpec(shape, lambda i: (0, 0))

    out = pl.pallas_call(
        mlp_kernel,
        out_shape=jax.ShapeDtypeStruct((b_pad, N_PAD), jnp.float32),
        grid=grid,
        in_specs=[
            pl.BlockSpec((tb, K_PAD), lambda i: (i, 0)),   # x: tiled over batch
            w_spec((K_PAD, HID)), w_spec((1, HID)),        # w1, b1
            w_spec((HID, HID)),   w_spec((1, HID)),        # w2, b2
            w_spec((HID, N_PAD)), w_spec((1, N_PAD)),      # w3, b3 (padded N)
        ],
        out_specs=pl.BlockSpec((tb, N_PAD), lambda i: (i, 0)),
        compiler_params=pltpu.CompilerParams(
            dimension_semantics=("parallel",)),            # shard batch on v7x's 2 TCs
    )(x_flat, w1_p, b1, w2, b2, w3_p, b3_p)

    return out[:B, :N_OUT]


def init_params(key):
    """Deterministic init mimicking nn.Linear's uniform(-1/sqrt(fan_in), +)."""
    ks = jax.random.split(key, 6)

    def linear(kw, kb, fan_in, fan_out):
        bound = 1.0 / jnp.sqrt(fan_in)
        w = jax.random.uniform(kw, (fan_in, fan_out), jnp.float32, -bound, bound)
        b = jax.random.uniform(kb, (1, fan_out), jnp.float32, -bound, bound)
        return w, b

    w1, b1 = linear(ks[0], ks[1], K_IN, HID)
    w2, b2 = linear(ks[2], ks[3], HID, HID)
    w3, b3 = linear(ks[4], ks[5], HID, N_OUT)
    return (w1, b1, w2, b2, w3, b3)


def reference_forward(x, params):
    w1, b1, w2, b2, w3, b3 = params
    h = x.reshape(x.shape[0], -1)
    h = jnp.maximum(h @ w1 + b1, 0.0)
    h = jnp.maximum(h @ w2 + b2, 0.0)
    return h @ w3 + b3


if __name__ == "__main__":
    key = jax.random.PRNGKey(0)
    k_params, k_x1, k_x2 = jax.random.split(key, 3)
    params = init_params(k_params)

    # --- small batch (as in the original module's usage), f32 path ---
    B = 2
    x = jax.random.uniform(k_x1, (B, 28, 28), jnp.float32)
    out = jax.block_until_ready(neural_network_forward(x, params))
    ref = reference_forward(x, params)
    assert out.shape == (B, N_OUT)
    assert jnp.allclose(out, ref, atol=1e-4, rtol=1e-4)

    # --- multi-tile batch: exercises the batch grid / padding path (f32) ---
    B2 = 300
    x2 = jax.random.uniform(k_x2, (B2, 28, 28), jnp.float32)
    out2 = jax.block_until_ready(neural_network_forward(x2, params))
    ref2 = reference_forward(x2, params)
    assert out2.shape == (B2, N_OUT)
    assert jnp.allclose(out2, ref2, atol=1e-4, rtol=1e-4)

    # --- bf16 matmul path (v6e/v7x lever), f32 accumulation; loose tolerance ---
    out_bf16 = jax.block_until_ready(
        neural_network_forward(x2, params, compute_dtype=jnp.bfloat16))
    assert out_bf16.shape == (B2, N_OUT)
    assert jnp.all(jnp.isfinite(out_bf16))
    assert jnp.allclose(out_bf16, ref2, atol=1e-1, rtol=1e-1)

    print("KERNEL_OK")
</pallas_src>

<mosaic_0001>
module attributes {stable_mosaic.version = 11 : i64} {
  func.func @mlp_kernel(%arg0: i32, %arg1: memref<8x896xf32, #tpu.memory_space<vmem>>, %arg2: memref<896x512xf32, #tpu.memory_space<vmem>>, %arg3: memref<1x512xf32, #tpu.memory_space<vmem>>, %arg4: memref<512x512xf32, #tpu.memory_space<vmem>>, %arg5: memref<1x512xf32, #tpu.memory_space<vmem>>, %arg6: memref<512x128xf32, #tpu.memory_space<vmem>>, %arg7: memref<1x128xf32, #tpu.memory_space<vmem>>, %arg8: memref<8x128xf32, #tpu.memory_space<vmem>>) attributes {dimension_semantics = [#tpu.dimension_semantics<parallel>], iteration_bounds = array<i64: 1>, scalar_prefetch = 0 : i64, scratch_operands = 0 : i64, tpu.core_type = #tpu.core_type<tc>, window_params = [{transform_indices = @transform_0, window_bounds = array<i64: 8, 896>}, {pipeline_mode = #tpu.pipeline_mode<synchronous>, transform_indices = @transform_1, window_bounds = array<i64: 896, 512>}, {pipeline_mode = #tpu.pipeline_mode<synchronous>, transform_indices = @transform_2, window_bounds = array<i64: 1, 512>}, {pipeline_mode = #tpu.pipeline_mode<synchronous>, transform_indices = @transform_3, window_bounds = array<i64: 512, 512>}, {pipeline_mode = #tpu.pipeline_mode<synchronous>, transform_indices = @transform_4, window_bounds = array<i64: 1, 512>}, {pipeline_mode = #tpu.pipeline_mode<synchronous>, transform_indices = @transform_5, window_bounds = array<i64: 512, 128>}, {pipeline_mode = #tpu.pipeline_mode<synchronous>, transform_indices = @transform_6, window_bounds = array<i64: 1, 128>}, {transform_indices = @transform_7, window_bounds = array<i64: 8, 128>}]} {
    %c0 = arith.constant 0 : index
    %c0_0 = arith.constant 0 : index
    %0 = vector.load %arg1[%c0, %c0_0] : memref<8x896xf32, #tpu.memory_space<vmem>>, vector<8x896xf32>
    %c0_1 = arith.constant 0 : index
    %c0_2 = arith.constant 0 : index
    %1 = vector.load %arg2[%c0_1, %c0_2] : memref<896x512xf32, #tpu.memory_space<vmem>>, vector<896x512xf32>
    %cst = arith.constant dense<0.000000e+00> : vector<8x512xf32>
    %2 = tpu.matmul %0, %1, %cst {dimension_numbers = #tpu.dot_dimension_numbers<[1], [0], [0], [1], [0, 0, 1, 1], [], []>} : vector<8x896xf32>, vector<896x512xf32>, vector<8x512xf32> -> vector<8x512xf32>
    %c0_3 = arith.constant 0 : index
    %c0_4 = arith.constant 0 : index
    %3 = vector.load %arg3[%c0_3, %c0_4] : memref<1x512xf32, #tpu.memory_space<vmem>>, vector<1x512xf32>
    %4 = vector.broadcast %3 : vector<1x512xf32> to vector<8x512xf32>
    %5 = arith.addf %2, %4 : vector<8x512xf32>
    %cst_5 = arith.constant 0.000000e+00 : f32
    %6 = vector.broadcast %cst_5 : f32 to vector<8x512xf32>
    %7 = arith.maximumf %5, %6 : vector<8x512xf32>
    %c0_6 = arith.constant 0 : index
    %c0_7 = arith.constant 0 : index
    %8 = vector.load %arg4[%c0_6, %c0_7] : memref<512x512xf32, #tpu.memory_space<vmem>>, vector<512x512xf32>
    %cst_8 = arith.constant dense<0.000000e+00> : vector<8x512xf32>
    %9 = tpu.matmul %7, %8, %cst_8 {dimension_numbers = #tpu.dot_dimension_numbers<[1], [0], [0], [1], [0, 0, 1, 1], [], []>} : vector<8x512xf32>, vector<512x512xf32>, vector<8x512xf32> -> vector<8x512xf32>
    %c0_9 = arith.constant 0 : index
    %c0_10 = arith.constant 0 : index
    %10 = vector.load %arg5[%c0_9, %c0_10] : memref<1x512xf32, #tpu.memory_space<vmem>>, vector<1x512xf32>
    %11 = vector.broadcast %10 : vector<1x512xf32> to vector<8x512xf32>
    %12 = arith.addf %9, %11 : vector<8x512xf32>
    %cst_11 = arith.constant 0.000000e+00 : f32
    %13 = vector.broadcast %cst_11 : f32 to vector<8x512xf32>
    %14 = arith.maximumf %12, %13 : vector<8x512xf32>
    %c0_12 = arith.constant 0 : index
    %c0_13 = arith.constant 0 : index
    %15 = vector.load %arg6[%c0_12, %c0_13] : memref<512x128xf32, #tpu.memory_space<vmem>>, vector<512x128xf32>
    %cst_14 = arith.constant dense<0.000000e+00> : vector<8x128xf32>
    %16 = tpu.matmul %14, %15, %cst_14 {dimension_numbers = #tpu.dot_dimension_numbers<[1], [0], [0], [1], [0, 0, 1, 1], [], []>} : vector<8x512xf32>, vector<512x128xf32>, vector<8x128xf32> -> vector<8x128xf32>
    %c0_15 = arith.constant 0 : index
    %c0_16 = arith.constant 0 : index
    %17 = vector.load %arg7[%c0_15, %c0_16] : memref<1x128xf32, #tpu.memory_space<vmem>>, vector<1x128xf32>
    %18 = vector.broadcast %17 : vector<1x128xf32> to vector<8x128xf32>
    %19 = arith.addf %16, %18 : vector<8x128xf32>
    %c0_17 = arith.constant 0 : index
    %c0_18 = arith.constant 0 : index
    %20 = vector.load %arg8[%c0_17, %c0_18] : memref<8x128xf32, #tpu.memory_space<vmem>>, vector<8x128xf32>
    tpu.vector_store %arg8[%c0_17, %c0_18], %19 {strides = array<i32>} : memref<8x128xf32, #tpu.memory_space<vmem>>, vector<8x128xf32>,
    return
  }
  func.func @transform_0(%arg0: i32) -> (i32, i32) {
    %c0_i32 = arith.constant 0 : i32
    %c0_i32_0 = arith.constant 0 : i32
    return %arg0, %c0_i32 : i32, i32
  }
  func.func @transform_1(%arg0: i32) -> (i32, i32) {
    %c0_i32 = arith.constant 0 : i32
    %c0_i32_0 = arith.constant 0 : i32
    %c0_i32_1 = arith.constant 0 : i32
    return %c0_i32, %c0_i32_0 : i32, i32
  }
  func.func @transform_2(%arg0: i32) -> (i32, i32) {
    %c0_i32 = arith.constant 0 : i32
    %c0_i32_0 = arith.constant 0 : i32
    %c0_i32_1 = arith.constant 0 : i32
    return %c0_i32, %c0_i32_0 : i32, i32
  }
  func.func @transform_3(%arg0: i32) -> (i32, i32) {
    %c0_i32 = arith.constant 0 : i32
    %c0_i32_0 = arith.constant 0 : i32
    %c0_i32_1 = arith.constant 0 : i32
    return %c0_i32, %c0_i32_0 : i32, i32
  }
  func.func @transform_4(%arg0: i32) -> (i32, i32) {
    %c0_i32 = arith.constant 0 : i32
    %c0_i32_0 = arith.constant 0 : i32
    %c0_i32_1 = arith.constant 0 : i32
    return %c0_i32, %c0_i32_0 : i32, i32
  }
  func.func @transform_5(%arg0: i32) -> (i32, i32) {
    %c0_i32 = arith.constant 0 : i32
    %c0_i32_0 = arith.constant 0 : i32
    %c0_i32_1 = arith.constant 0 : i32
    return %c0_i32, %c0_i32_0 : i32, i32
  }
  func.func @transform_6(%arg0: i32) -> (i32, i32) {
    %c0_i32 = arith.constant 0 : i32
    %c0_i32_0 = arith.constant 0 : i32
    %c0_i32_1 = arith.constant 0 : i32
    return %c0_i32, %c0_i32_0 : i32, i32
  }
  func.func @transform_7(%arg0: i32) -> (i32, i32) {
    %c0_i32 = arith.constant 0 : i32
    %c0_i32_0 = arith.constant 0 : i32
    return %arg0, %c0_i32 : i32, i32
  }
}

</mosaic_0001>

<llo_original>
// kernel: neural_network_forward.1
$region0: #{neural_network_forward.1}
  #allocation0 [shape = 'u32[]', space=smem, size = 0x4, offset = 0x4, fixed_abs, tag = 'smem constant byte address 0x4 - core index']
  #allocation1 [shape = 'u32[144,128]{1,0:T(1,128)}', space=vmem, size = 0x12000, scoped, tag = 'internal scratch']
  %s0 = inlined_call_operand.vmem [shape: f32[8,896], index: 0, kind: input, shape index: {}]
  %s1 = inlined_call_operand.vmem [shape: f32[896,512], index: 1, kind: input, shape index: {}]
  %s2 = inlined_call_operand.vmem [shape: f32[1,512], index: 2, kind: input, shape index: {}]
  %s3 = inlined_call_operand.vmem [shape: f32[512,512], index: 3, kind: input, shape index: {}]
  %s4 = inlined_call_operand.vmem [shape: f32[1,512], index: 4, kind: input, shape index: {}]
  %s5 = inlined_call_operand.vmem [shape: f32[512,128], index: 5, kind: input, shape index: {}]
  %s6 = inlined_call_operand.vmem [shape: f32[1,128], index: 6, kind: input, shape index: {}]
  %s7 = inlined_call_operand.vmem [shape: f32[8,128], index: 7, kind: output, shape index: {}]
  %s8 = sld [smem:[#allocation0]]
  $region38: #{neural_network_forward.1} parent=0
    _
  %s10 = ssub.s32 1, %s8
  %s11 = scalar_select 0, %s10, %s8
  // Predicated region
  $region2: #{neural_network_forward.1} parent=0 // pred_check
    _
  $region3: #{neural_network_forward.1} parent=0 // pred_check_branch
    %13 = sbr.rel (0) target = $region5
  $region4: #{neural_network_forward.1} parent=0 // pred_region
    _
  $region5: #{neural_network_forward.1} parent=0 // pred_fallthru
    _
  // Predicated region
  $region6: #{neural_network_forward.1} parent=0 // pred_check
    _
  $region7: #{neural_network_forward.1} parent=0 // pred_check_branch
    %15 = sbr.rel (0) target = $region9
  $region8: #{neural_network_forward.1} parent=0 // pred_region
    _
  $region9: #{neural_network_forward.1} parent=0 // pred_fallthru
    _
  // Predicated region
  $region10: #{neural_network_forward.1} parent=0 // pred_check
    _
  $region11: #{neural_network_forward.1} parent=0 // pred_check_branch
    %17 = sbr.rel (0) target = $region13
  $region12: #{neural_network_forward.1} parent=0 // pred_region
    _
  $region13: #{neural_network_forward.1} parent=0 // pred_fallthru
    _
  // Predicated region
  $region14: #{neural_network_forward.1} parent=0 // pred_check
    _
  $region15: #{neural_network_forward.1} parent=0 // pred_check_branch
    %19 = sbr.rel (0) target = $region17
  $region16: #{neural_network_forward.1} parent=0 // pred_region
    _
  $region17: #{neural_network_forward.1} parent=0 // pred_fallthru
    _
  // Predicated region
  $region18: #{neural_network_forward.1} parent=0 // pred_check
    _
  $region19: #{neural_network_forward.1} parent=0 // pred_check_branch
    %21 = sbr.rel (0) target = $region21
  $region20: #{neural_network_forward.1} parent=0 // pred_region
    _
  $region21: #{neural_network_forward.1} parent=0 // pred_fallthru
    _
  // Predicated region
  $region22: #{neural_network_forward.1} parent=0 // pred_check
    _
  $region23: #{neural_network_forward.1} parent=0 // pred_check_branch
    %23 = sbr.rel (0) target = $region25
  $region24: #{neural_network_forward.1} parent=0 // pred_region
    _
  $region25: #{neural_network_forward.1} parent=0 // pred_fallthru
    _
  // Predicated region
  $region26: #{neural_network_forward.1} parent=0 // pred_check
    _
  $region27: #{neural_network_forward.1} parent=0 // pred_check_branch
    %25 = sbr.rel (0) target = $region29
  $region28: #{neural_network_forward.1} parent=0 // pred_region
    _
  $region29: #{neural_network_forward.1} parent=0 // pred_fallthru
    _
  %v26 = vld [vmem:[%s0] sm:$0xff]
  %v27 = vld [vmem:[%s0 + $0x8] sm:$0xff]
  %v28 = vld [vmem:[%s0 + $0x10] sm:$0xff]
  %v29 = vld [vmem:[%s0 + $0x18] sm:$0xff]
  %v30 = vld [vmem:[%s0 + $0x20] sm:$0xff]
  %v31 = vld [vmem:[%s0 + $0x28] sm:$0xff]
  %v32 = vld [vmem:[%s0 + $0x30] sm:$0xff]
  %v33 = vld [vmem:[%s1] sm:$0xff]
  %v34 = vld [vmem:[%s1 + $0x8] sm:$0xff]
  %v35 = vld [vmem:[%s1 + $0x10] sm:$0xff]
  %v36 = vld [vmem:[%s1 + $0x18] sm:$0xff]
  %v37 = vld [vmem:[%s1 + $0x20] sm:$0xff]
  %v38 = vld [vmem:[%s1 + $0x28] sm:$0xff]
  %v39 = vld [vmem:[%s1 + $0x30] sm:$0xff]
  %v40 = vld [vmem:[%s1 + $0x38] sm:$0xff]
  %v41 = vld [vmem:[%s1 + $0x40] sm:$0xff]
  %v42 = vld [vmem:[%s1 + $0x48] sm:$0xff]
  %v43 = vld [vmem:[%s1 + $0x50] sm:$0xff]
  %v44 = vld [vmem:[%s1 + $0x58] sm:$0xff]
  %v45 = vld [vmem:[%s1 + $0x60] sm:$0xff]
  %v46 = vld [vmem:[%s1 + $0x68] sm:$0xff]
  %v47 = vld [vmem:[%s1 + $0x70] sm:$0xff]
  %v48 = vld [vmem:[%s1 + $0x78] sm:$0xff]
  %v49 = vld [vmem:[%s1 + $0x80] sm:$0xff]
  %v50 = vld [vmem:[%s1 + $0x88] sm:$0xff]
  %v51 = vld [vmem:[%s1 + $0x90] sm:$0xff]
  %v52 = vld [vmem:[%s1 + $0x98] sm:$0xff]
  %v53 = vld [vmem:[%s1 + $0xa0] sm:$0xff]
  %v54 = vld [vmem:[%s1 + $0xa8] sm:$0xff]
  %v55 = vld [vmem:[%s1 + $0xb0] sm:$0xff]
  %v56 = vld [vmem:[%s1 + $0xb8] sm:$0xff]
  %v57 = vld [vmem:[%s1 + $0xc0] sm:$0xff]
  %v58 = vld [vmem:[%s1 + $0xc8] sm:$0xff]
  %v59 = vld [vmem:[%s1 + $0xd0] sm:$0xff]
  %v60 = vld [vmem:[%s1 + $0xd8] sm:$0xff]
  %v61 = vld [vmem:[%s1 + $0xe0] sm:$0xff]
  %v62 = vld [vmem:[%s1 + $0xe8] sm:$0xff]
  %v63 = vld [vmem:[%s1 + $0xf0] sm:$0xff]
  %v64 = vld [vmem:[%s1 + $0xf8] sm:$0xff]
  %v65 = vld [vmem:[%s1 + $0x100] sm:$0xff]
  %v66 = vld [vmem:[%s1 + $0x108] sm:$0xff]
  %v67 = vld [vmem:[%s1 + $0x110] sm:$0xff]
  %v68 = vld [vmem:[%s1 + $0x118] sm:$0xff]
  %v69 = vld [vmem:[%s1 + $0x120] sm:$0xff]
  %v70 = vld [vmem:[%s1 + $0x128] sm:$0xff]
  %v71 = vld [vmem:[%s1 + $0x130] sm:$0xff]
  %v72 = vld [vmem:[%s1 + $0x138] sm:$0xff]
  %v73 = vld [vmem:[%s1 + $0x140] sm:$0xff]
  %v74 = vld [vmem:[%s1 + $0x148] sm:$0xff]
  %v75 = vld [vmem:[%s1 + $0x150] sm:$0xff]
  %v76 = vld [vmem:[%s1 + $0x158] sm:$0xff]
  %v77 = vld [vmem:[%s1 + $0x160] sm:$0xff]
  %v78 = vld [vmem:[%s1 + $0x168] sm:$0xff]
  %v79 = vld [vmem:[%s1 + $0x170] sm:$0xff]
  %v80 = vld [vmem:[%s1 + $0x178] sm:$0xff]
  %v81 = vld [vmem:[%s1 + $0x180] sm:$0xff]
  %v82 = vld [vmem:[%s1 + $0x188] sm:$0xff]
  %v83 = vld [vmem:[%s1 + $0x190] sm:$0xff]
  %v84 = vld [vmem:[%s1 + $0x198] sm:$0xff]
  %v85 = vld [vmem:[%s1 + $0x1a0] sm:$0xff]
  %v86 = vld [vmem:[%s1 + $0x1a8] sm:$0xff]
  %v87 = vld [vmem:[%s1 + $0x1b0] sm:$0xff]
  %v88 = vld [vmem:[%s1 + $0x1b8] sm:$0xff]
  %v89 = vld [vmem:[%s1 + $0x1c0] sm:$0xff]
  %v90 = vld [vmem:[%s1 + $0x1c8] sm:$0xff]
  %v91 = vld [vmem:[%s1 + $0x1d0] sm:$0xff]
  %v92 = vld [vmem:[%s1 + $0x1d8] sm:$0xff]
  %v93 = vld [vmem:[%s1 + $0x1e0] sm:$0xff]
  %v94 = vld [vmem:[%s1 + $0x1e8] sm:$0xff]
  %v95 = vld [vmem:[%s1 + $0x1f0] sm:$0xff]
  %v96 = vld [vmem:[%s1 + $0x1f8] sm:$0xff]
  %v97 = vld [vmem:[%s1 + $0x200] sm:$0xff]
  %v98 = vld [vmem:[%s1 + $0x208] sm:$0xff]
  %v99 = vld [vmem:[%s1 + $0x210] sm:$0xff]
  %v100 = vld [vmem:[%s1 + $0x218] sm:$0xff]
  %v101 = vld [vmem:[%s1 + $0x220] sm:$0xff]
  %v102 = vld [vmem:[%s1 + $0x228] sm:$0xff]
  %v103 = vld [vmem:[%s1 + $0x230] sm:$0xff]
  %v104 = vld [vmem:[%s1 + $0x238] sm:$0xff]
  %v105 = vld [vmem:[%s1 + $0x240] sm:$0xff]
  %v106 = vld [vmem:[%s1 + $0x248] sm:$0xff]
  %v107 = vld [vmem:[%s1 + $0x250] sm:$0xff]
  %v108 = vld [vmem:[%s1 + $0x258] sm:$0xff]
  %v109 = vld [vmem:[%s1 + $0x260] sm:$0xff]
  %v110 = vld [vmem:[%s1 + $0x268] sm:$0xff]
  %v111 = vld [vmem:[%s1 + $0x270] sm:$0xff]
  %v112 = vld [vmem:[%s1 + $0x278] sm:$0xff]
  %v113 = vld [vmem:[%s1 + $0x280] sm:$0xff]
  %v114 = vld [vmem:[%s1 + $0x288] sm:$0xff]
  %v115 = vld [vmem:[%s1 + $0x290] sm:$0xff]
  %v116 = vld [vmem:[%s1 + $0x298] sm:$0xff]
  %v117 = vld [vmem:[%s1 + $0x2a0] sm:$0xff]
  %v118 = vld [vmem:[%s1 + $0x2a8] sm:$0xff]
  %v119 = vld [vmem:[%s1 + $0x2b0] sm:$0xff]
  %v120 = vld [vmem:[%s1 + $0x2b8] sm:$0xff]
  %v121 = vld [vmem:[%s1 + $0x2c0] sm:$0xff]
  %v122 = vld [vmem:[%s1 + $0x2c8] sm:$0xff]
  %v123 = vld [vmem:[%s1 + $0x2d0] sm:$0xff]
  %v124 = vld [vmem:[%s1 + $0x2d8] sm:$0xff]
  %v125 = vld [vmem:[%s1 + $0x2e0] sm:$0xff]
  %v126 = vld [vmem:[%s1 + $0x2e8] sm:$0xff]
  %v127 = vld [vmem:[%s1 + $0x2f0] sm:$0xff]
  %v128 = vld [vmem:[%s1 + $0x2f8] sm:$0xff]
  %v129 = vld [vmem:[%s1 + $0x300] sm:$0xff]
  %v130 = vld [vmem:[%s1 + $0x308] sm:$0xff]
  %v131 = vld [vmem:[%s1 + $0x310] sm:$0xff]
  %v132 = vld [vmem:[%s1 + $0x318] sm:$0xff]
  %v133 = vld [vmem:[%s1 + $0x320] sm:$0xff]
  %v134 = vld [vmem:[%s1 + $0x328] sm:$0xff]
  %v135 = vld [vmem:[%s1 + $0x330] sm:$0xff]
  %v136 = vld [vmem:[%s1 + $0x338] sm:$0xff]
  %v137 = vld [vmem:[%s1 + $0x340] sm:$0xff]
  %v138 = vld [vmem:[%s1 + $0x348] sm:$0xff]
  %v139 = vld [vmem:[%s1 + $0x350] sm:$0xff]
  %v140 = vld [vmem:[%s1 + $0x358] sm:$0xff]
  %v141 = vld [vmem:[%s1 + $0x360] sm:$0xff]
  %v142 = vld [vmem:[%s1 + $0x368] sm:$0xff]
  %v143 = vld [vmem:[%s1 + $0x370] sm:$0xff]
  %v144 = vld [vmem:[%s1 + $0x378] sm:$0xff]
  %v145 = vld [vmem:[%s1 + $0x380] sm:$0xff]
  %v146 = vld [vmem:[%s1 + $0x388] sm:$0xff]
  %v147 = vld [vmem:[%s1 + $0x390] sm:$0xff]
  %v148 = vld [vmem:[%s1 + $0x398] sm:$0xff]
  %v149 = vld [vmem:[%s1 + $0x3a0] sm:$0xff]
  %v150 = vld [vmem:[%s1 + $0x3a8] sm:$0xff]
  %v151 = vld [vmem:[%s1 + $0x3b0] sm:$0xff]
  %v152 = vld [vmem:[%s1 + $0x3b8] sm:$0xff]
  %v153 = vld [vmem:[%s1 + $0x3c0] sm:$0xff]
  %v154 = vld [vmem:[%s1 + $0x3c8] sm:$0xff]
  %v155 = vld [vmem:[%s1 + $0x3d0] sm:$0xff]
  %v156 = vld [vmem:[%s1 + $0x3d8] sm:$0xff]
  %v157 = vld [vmem:[%s1 + $0x3e0] sm:$0xff]
  %v158 = vld [vmem:[%s1 + $0x3e8] sm:$0xff]
  %v159 = vld [vmem:[%s1 + $0x3f0] sm:$0xff]
  %v160 = vld [vmem:[%s1 + $0x3f8] sm:$0xff]
  %v161 = vld [vmem:[%s1 + $0x400] sm:$0xff]
  %v162 = vld [vmem:[%s1 + $0x408] sm:$0xff]
  %v163 = vld [vmem:[%s1 + $0x410] sm:$0xff]
  %v164 = vld [vmem:[%s1 + $0x418] sm:$0xff]
  %v165 = vld [vmem:[%s1 + $0x420] sm:$0xff]
  %v166 = vld [vmem:[%s1 + $0x428] sm:$0xff]
  %v167 = vld [vmem:[%s1 + $0x430] sm:$0xff]
  %v168 = vld [vmem:[%s1 + $0x438] sm:$0xff]
  %v169 = vld [vmem:[%s1 + $0x440] sm:$0xff]
  %v170 = vld [vmem:[%s1 + $0x448] sm:$0xff]
  %v171 = vld [vmem:[%s1 + $0x450] sm:$0xff]
  %v172 = vld [vmem:[%s1 + $0x458] sm:$0xff]
  %v173 = vld [vmem:[%s1 + $0x460] sm:$0xff]
  %v174 = vld [vmem:[%s1 + $0x468] sm:$0xff]
  %v175 = vld [vmem:[%s1 + $0x470] sm:$0xff]
  %v176 = vld [vmem:[%s1 + $0x478] sm:$0xff]
  %v177 = vld [vmem:[%s1 + $0x480] sm:$0xff]
  %v178 = vld [vmem:[%s1 + $0x488] sm:$0xff]
  %v179 = vld [vmem:[%s1 + $0x490] sm:$0xff]
  %v180 = vld [vmem:[%s1 + $0x498] sm:$0xff]
  %v181 = vld [vmem:[%s1 + $0x4a0] sm:$0xff]
  %v182 = vld [vmem:[%s1 + $0x4a8] sm:$0xff]
  %v183 = vld [vmem:[%s1 + $0x4b0] sm:$0xff]
  %v184 = vld [vmem:[%s1 + $0x4b8] sm:$0xff]
  %v185 = vld [vmem:[%s1 + $0x4c0] sm:$0xff]
  %v186 = vld [vmem:[%s1 + $0x4c8] sm:$0xff]
  %v187 = vld [vmem:[%s1 + $0x4d0] sm:$0xff]
  %v188 = vld [vmem:[%s1 + $0x4d8] sm:$0xff]
  %v189 = vld [vmem:[%s1 + $0x4e0] sm:$0xff]
  %v190 = vld [vmem:[%s1 + $0x4e8] sm:$0xff]
  %v191 = vld [vmem:[%s1 + $0x4f0] sm:$0xff]
  %v192 = vld [vmem:[%s1 + $0x4f8] sm:$0xff]
  %v193 = vld [vmem:[%s1 + $0x500] sm:$0xff]
  %v194 = vld [vmem:[%s1 + $0x508] sm:$0xff]
  %v195 = vld [vmem:[%s1 + $0x510] sm:$0xff]
  %v196 = vld [vmem:[%s1 + $0x518] sm:$0xff]
  %v197 = vld [vmem:[%s1 + $0x520] sm:$0xff]
  %v198 = vld [vmem:[%s1 + $0x528] sm:$0xff]
  %v199 = vld [vmem:[%s1 + $0x530] sm:$0xff]
  %v200 = vld [vmem:[%s1 + $0x538] sm:$0xff]
  %v201 = vld [vmem:[%s1 + $0x540] sm:$0xff]
  %v202 = vld [vmem:[%s1 + $0x548] sm:$0xff]
  %v203 = vld [vmem:[%s1 + $0x550] sm:$0xff]
  %v204 = vld [vmem:[%s1 + $0x558] sm:$0xff]
  %v205 = vld [vmem:[%s1 + $0x560] sm:$0xff]
  %v206 = vld [vmem:[%s1 + $0x568] sm:$0xff]
  %v207 = vld [vmem:[%s1 + $0x570] sm:$0xff]
  %v208 = vld [vmem:[%s1 + $0x578] sm:$0xff]
  %v209 = vld [vmem:[%s1 + $0x580] sm:$0xff]
  %v210 = vld [vmem:[%s1 + $0x588] sm:$0xff]
  %v211 = vld [vmem:[%s1 + $0x590] sm:$0xff]
  %v212 = vld [vmem:[%s1 + $0x598] sm:$0xff]
  %v213 = vld [vmem:[%s1 + $0x5a0] sm:$0xff]
  %v214 = vld [vmem:[%s1 + $0x5a8] sm:$0xff]
  %v215 = vld [vmem:[%s1 + $0x5b0] sm:$0xff]
  %v216 = vld [vmem:[%s1 + $0x5b8] sm:$0xff]
  %v217 = vld [vmem:[%s1 + $0x5c0] sm:$0xff]
  %v218 = vld [vmem:[%s1 + $0x5c8] sm:$0xff]
  %v219 = vld [vmem:[%s1 + $0x5d0] sm:$0xff]
  %v220 = vld [vmem:[%s1 + $0x5d8] sm:$0xff]
  %v221 = vld [vmem:[%s1 + $0x5e0] sm:$0xff]
  %v222 = vld [vmem:[%s1 + $0x5e8] sm:$0xff]
  %v223 = vld [vmem:[%s1 + $0x5f0] sm:$0xff]
  %v224 = vld [vmem:[%s1 + $0x5f8] sm:$0xff]
  %v225 = vld [vmem:[%s1 + $0x600] sm:$0xff]
  %v226 = vld [vmem:[%s1 + $0x608] sm:$0xff]
  %v227 = vld [vmem:[%s1 + $0x610] sm:$0xff]
  %v228 = vld [vmem:[%s1 + $0x618] sm:$0xff]
  %v229 = vld [vmem:[%s1 + $0x620] sm:$0xff]
  %v230 = vld [vmem:[%s1 + $0x628] sm:$0xff]
  %v231 = vld [vmem:[%s1 + $0x630] sm:$0xff]
  %v232 = vld [vmem:[%s1 + $0x638] sm:$0xff]
  %v233 = vld [vmem:[%s1 + $0x640] sm:$0xff]
  %v234 = vld [vmem:[%s1 + $0x648] sm:$0xff]
  %v235 = vld [vmem:[%s1 + $0x650] sm:$0xff]
  %v236 = vld [vmem:[%s1 + $0x658] sm:$0xff]
  %v237 = vld [vmem:[%s1 + $0x660] sm:$0xff]
  %v238 = vld [vmem:[%s1 + $0x668] sm:$0xff]
  %v239 = vld [vmem:[%s1 + $0x670] sm:$0xff]
  %v240 = vld [vmem:[%s1 + $0x678] sm:$0xff]
  %v241 = vld [vmem:[%s1 + $0x680] sm:$0xff]
  %v242 = vld [vmem:[%s1 + $0x688] sm:$0xff]
  %v243 = vld [vmem:[%s1 + $0x690] sm:$0xff]
  %v244 = vld [vmem:[%s1 + $0x698] sm:$0xff]
  %v245 = vld [vmem:[%s1 + $0x6a0] sm:$0xff]
  %v246 = vld [vmem:[%s1 + $0x6a8] sm:$0xff]
  %v247 = vld [vmem:[%s1 + $0x6b0] sm:$0xff]
  %v248 = vld [vmem:[%s1 + $0x6b8] sm:$0xff]
  %v249 = vld [vmem:[%s1 + $0x6c0] sm:$0xff]
  %v250 = vld [vmem:[%s1 + $0x6c8] sm:$0xff]
  %v251 = vld [vmem:[%s1 + $0x6d0] sm:$0xff]
  %v252 = vld [vmem:[%s1 + $0x6d8] sm:$0xff]
  %v253 = vld [vmem:[%s1 + $0x6e0] sm:$0xff]
  %v254 = vld [vmem:[%s1 + $0x6e8] sm:$0xff]
  %v255 = vld [vmem:[%s1 + $0x6f0] sm:$0xff]
  %v256 = vld [vmem:[%s1 + $0x6f8] sm:$0xff]
  %v257 = vld [vmem:[%s1 + $0x700] sm:$0xff]
  %v258 = vld [vmem:[%s1 + $0x708] sm:$0xff]
  %v259 = vld [vmem:[%s1 + $0x710] sm:$0xff]
  %v260 = vld [vmem:[%s1 + $0x718] sm:$0xff]
  %v261 = vld [vmem:[%s1 + $0x720] sm:$0xff]
  %v262 = vld [vmem:[%s1 + $0x728] sm:$0xff]
  %v263 = vld [vmem:[%s1 + $0x730] sm:$0xff]
  %v264 = vld [vmem:[%s1 + $0x738] sm:$0xff]
  %v265 = vld [vmem:[%s1 + $0x740] sm:$0xff]
  %v266 = vld [vmem:[%s1 + $0x748] sm:$0xff]
  %v267 = vld [vmem:[%s1 + $0x750] sm:$0xff]
  %v268 = vld [vmem:[%s1 + $0x758] sm:$0xff]
  %v269 = vld [vmem:[%s1 + $0x760] sm:$0xff]
  %v270 = vld [vmem:[%s1 + $0x768] sm:$0xff]
  %v271 = vld [vmem:[%s1 + $0x770] sm:$0xff]
  %v272 = vld [vmem:[%s1 + $0x778] sm:$0xff]
  %v273 = vld [vmem:[%s1 + $0x780] sm:$0xff]
  %v274 = vld [vmem:[%s1 + $0x788] sm:$0xff]
  %v275 = vld [vmem:[%s1 + $0x790] sm:$0xff]
  %v276 = vld [vmem:[%s1 + $0x798] sm:$0xff]
  %v277 = vld [vmem:[%s1 + $0x7a0] sm:$0xff]
  %v278 = vld [vmem:[%s1 + $0x7a8] sm:$0xff]
  %v279 = vld [vmem:[%s1 + $0x7b0] sm:$0xff]
  %v280 = vld [vmem:[%s1 + $0x7b8] sm:$0xff]
  %v281 = vld [vmem:[%s1 + $0x7c0] sm:$0xff]
  %v282 = vld [vmem:[%s1 + $0x7c8] sm:$0xff]
  %v283 = vld [vmem:[%s1 + $0x7d0] sm:$0xff]
  %v284 = vld [vmem:[%s1 + $0x7d8] sm:$0xff]
  %v285 = vld [vmem:[%s1 + $0x7e0] sm:$0xff]
  %v286 = vld [vmem:[%s1 + $0x7e8] sm:$0xff]
  %v287 = vld [vmem:[%s1 + $0x7f0] sm:$0xff]
  %v288 = vld [vmem:[%s1 + $0x7f8] sm:$0xff]
  %v289 = vld [vmem:[%s1 + $0x800] sm:$0xff]
  %v290 = vld [vmem:[%s1 + $0x808] sm:$0xff]
  %v291 = vld [vmem:[%s1 + $0x810] sm:$0xff]
  %v292 = vld [vmem:[%s1 + $0x818] sm:$0xff]
  %v293 = vld [vmem:[%s1 + $0x820] sm:$0xff]
  %v294 = vld [vmem:[%s1 + $0x828] sm:$0xff]
  %v295 = vld [vmem:[%s1 + $0x830] sm:$0xff]
  %v296 = vld [vmem:[%s1 + $0x838] sm:$0xff]
  %v297 = vld [vmem:[%s1 + $0x840] sm:$0xff]
  %v298 = vld [vmem:[%s1 + $0x848] sm:$0xff]
  %v299 = vld [vmem:[%s1 + $0x850] sm:$0xff]
  %v300 = vld [vmem:[%s1 + $0x858] sm:$0xff]
  %v301 = vld [vmem:[%s1 + $0x860] sm:$0xff]
  %v302 = vld [vmem:[%s1 + $0x868] sm:$0xff]
  %v303 = vld [vmem:[%s1 + $0x870] sm:$0xff]
  %v304 = vld [vmem:[%s1 + $0x878] sm:$0xff]
  %v305 = vld [vmem:[%s1 + $0x880] sm:$0xff]
  %v306 = vld [vmem:[%s1 + $0x888] sm:$0xff]
  %v307 = vld [vmem:[%s1 + $0x890] sm:$0xff]
  %v308 = vld [vmem:[%s1 + $0x898] sm:$0xff]
  %v309 = vld [vmem:[%s1 + $0x8a0] sm:$0xff]
  %v310 = vld [vmem:[%s1 + $0x8a8] sm:$0xff]
  %v311 = vld [vmem:[%s1 + $0x8b0] sm:$0xff]
  %v312 = vld [vmem:[%s1 + $0x8b8] sm:$0xff]
  %v313 = vld [vmem:[%s1 + $0x8c0] sm:$0xff]
  %v314 = vld [vmem:[%s1 + $0x8c8] sm:$0xff]
  %v315 = vld [vmem:[%s1 + $0x8d0] sm:$0xff]
  %v316 = vld [vmem:[%s1 + $0x8d8] sm:$0xff]
  %v317 = vld [vmem:[%s1 + $0x8e0] sm:$0xff]
  %v318 = vld [vmem:[%s1 + $0x8e8] sm:$0xff]
  %v319 = vld [vmem:[%s1 + $0x8f0] sm:$0xff]
  %v320 = vld [vmem:[%s1 + $0x8f8] sm:$0xff]
  %v321 = vld [vmem:[%s1 + $0x900] sm:$0xff]
  %v322 = vld [vmem:[%s1 + $0x908] sm:$0xff]
  %v323 = vld [vmem:[%s1 + $0x910] sm:$0xff]
  %v324 = vld [vmem:[%s1 + $0x918] sm:$0xff]
  %v325 = vld [vmem:[%s1 + $0x920] sm:$0xff]
  %v326 = vld [vmem:[%s1 + $0x928] sm:$0xff]
  %v327 = vld [vmem:[%s1 + $0x930] sm:$0xff]
  %v328 = vld [vmem:[%s1 + $0x938] sm:$0xff]
  %v329 = vld [vmem:[%s1 + $0x940] sm:$0xff]
  %v330 = vld [vmem:[%s1 + $0x948] sm:$0xff]
  %v331 = vld [vmem:[%s1 + $0x950] sm:$0xff]
  %v332 = vld [vmem:[%s1 + $0x958] sm:$0xff]
  %v333 = vld [vmem:[%s1 + $0x960] sm:$0xff]
  %v334 = vld [vmem:[%s1 + $0x968] sm:$0xff]
  %v335 = vld [vmem:[%s1 + $0x970] sm:$0xff]
  %v336 = vld [vmem:[%s1 + $0x978] sm:$0xff]
  %v337 = vld [vmem:[%s1 + $0x980] sm:$0xff]
  %v338 = vld [vmem:[%s1 + $0x988] sm:$0xff]
  %v339 = vld [vmem:[%s1 + $0x990] sm:$0xff]
  %v340 = vld [vmem:[%s1 + $0x998] sm:$0xff]
  %v341 = vld [vmem:[%s1 + $0x9a0] sm:$0xff]
  %v342 = vld [vmem:[%s1 + $0x9a8] sm:$0xff]
  %v343 = vld [vmem:[%s1 + $0x9b0] sm:$0xff]
  %v344 = vld [vmem:[%s1 + $0x9b8] sm:$0xff]
  %v345 = vld [vmem:[%s1 + $0x9c0] sm:$0xff]
  %v346 = vld [vmem:[%s1 + $0x9c8] sm:$0xff]
  %v347 = vld [vmem:[%s1 + $0x9d0] sm:$0xff]
  %v348 = vld [vmem:[%s1 + $0x9d8] sm:$0xff]
  %v349 = vld [vmem:[%s1 + $0x9e0] sm:$0xff]
  %v350 = vld [vmem:[%s1 + $0x9e8] sm:$0xff]
  %v351 = vld [vmem:[%s1 + $0x9f0] sm:$0xff]
  %v352 = vld [vmem:[%s1 + $0x9f8] sm:$0xff]
  %v353 = vld [vmem:[%s1 + $0xa00] sm:$0xff]
  %v354 = vld [vmem:[%s1 + $0xa08] sm:$0xff]
  %v355 = vld [vmem:[%s1 + $0xa10] sm:$0xff]
  %v356 = vld [vmem:[%s1 + $0xa18] sm:$0xff]
  %v357 = vld [vmem:[%s1 + $0xa20] sm:$0xff]
  %v358 = vld [vmem:[%s1 + $0xa28] sm:$0xff]
  %v359 = vld [vmem:[%s1 + $0xa30] sm:$0xff]
  %v360 = vld [vmem:[%s1 + $0xa38] sm:$0xff]
  %v361 = vld [vmem:[%s1 + $0xa40] sm:$0xff]
  %v362 = vld [vmem:[%s1 + $0xa48] sm:$0xff]
  %v363 = vld [vmem:[%s1 + $0xa50] sm:$0xff]
  %v364 = vld [vmem:[%s1 + $0xa58] sm:$0xff]
  %v365 = vld [vmem:[%s1 + $0xa60] sm:$0xff]
  %v366 = vld [vmem:[%s1 + $0xa68] sm:$0xff]
  %v367 = vld [vmem:[%s1 + $0xa70] sm:$0xff]
  %v368 = vld [vmem:[%s1 + $0xa78] sm:$0xff]
  %v369 = vld [vmem:[%s1 + $0xa80] sm:$0xff]
  %v370 = vld [vmem:[%s1 + $0xa88] sm:$0xff]
  %v371 = vld [vmem:[%s1 + $0xa90] sm:$0xff]
  %v372 = vld [vmem:[%s1 + $0xa98] sm:$0xff]
  %v373 = vld [vmem:[%s1 + $0xaa0] sm:$0xff]
  %v374 = vld [vmem:[%s1 + $0xaa8] sm:$0xff]
  %v375 = vld [vmem:[%s1 + $0xab0] sm:$0xff]
  %v376 = vld [vmem:[%s1 + $0xab8] sm:$0xff]
  %v377 = vld [vmem:[%s1 + $0xac0] sm:$0xff]
  %v378 = vld [vmem:[%s1 + $0xac8] sm:$0xff]
  %v379 = vld [vmem:[%s1 + $0xad0] sm:$0xff]
  %v380 = vld [vmem:[%s1 + $0xad8] sm:$0xff]
  %v381 = vld [vmem:[%s1 + $0xae0] sm:$0xff]
  %v382 = vld [vmem:[%s1 + $0xae8] sm:$0xff]
  %v383 = vld [vmem:[%s1 + $0xaf0] sm:$0xff]
  %v384 = vld [vmem:[%s1 + $0xaf8] sm:$0xff]
  %v385 = vld [vmem:[%s1 + $0xb00] sm:$0xff]
  %v386 = vld [vmem:[%s1 + $0xb08] sm:$0xff]
  %v387 = vld [vmem:[%s1 + $0xb10] sm:$0xff]
  %v388 = vld [vmem:[%s1 + $0xb18] sm:$0xff]
  %v389 = vld [vmem:[%s1 + $0xb20] sm:$0xff]
  %v390 = vld [vmem:[%s1 + $0xb28] sm:$0xff]
  %v391 = vld [vmem:[%s1 + $0xb30] sm:$0xff]
  %v392 = vld [vmem:[%s1 + $0xb38] sm:$0xff]
  %v393 = vld [vmem:[%s1 + $0xb40] sm:$0xff]
  %v394 = vld [vmem:[%s1 + $0xb48] sm:$0xff]
  %v395 = vld [vmem:[%s1 + $0xb50] sm:$0xff]
  %v396 = vld [vmem:[%s1 + $0xb58] sm:$0xff]
  %v397 = vld [vmem:[%s1 + $0xb60] sm:$0xff]
  %v398 = vld [vmem:[%s1 + $0xb68] sm:$0xff]
  %v399 = vld [vmem:[%s1 + $0xb70] sm:$0xff]
  %v400 = vld [vmem:[%s1 + $0xb78] sm:$0xff]
  %v401 = vld [vmem:[%s1 + $0xb80] sm:$0xff]
  %v402 = vld [vmem:[%s1 + $0xb88] sm:$0xff]
  %v403 = vld [vmem:[%s1 + $0xb90] sm:$0xff]
  %v404 = vld [vmem:[%s1 + $0xb98] sm:$0xff]
  %v405 = vld [vmem:[%s1 + $0xba0] sm:$0xff]
  %v406 = vld [vmem:[%s1 + $0xba8] sm:$0xff]
  %v407 = vld [vmem:[%s1 + $0xbb0] sm:$0xff]
  %v408 = vld [vmem:[%s1 + $0xbb8] sm:$0xff]
  %v409 = vld [vmem:[%s1 + $0xbc0] sm:$0xff]
  %v410 = vld [vmem:[%s1 + $0xbc8] sm:$0xff]
  %v411 = vld [vmem:[%s1 + $0xbd0] sm:$0xff]
  %v412 = vld [vmem:[%s1 + $0xbd8] sm:$0xff]
  %v413 = vld [vmem:[%s1 + $0xbe0] sm:$0xff]
  %v414 = vld [vmem:[%s1 + $0xbe8] sm:$0xff]
  %v415 = vld [vmem:[%s1 + $0xbf0] sm:$0xff]
  %v416 = vld [vmem:[%s1 + $0xbf8] sm:$0xff]
  %v417 = vld [vmem:[%s1 + $0xc00] sm:$0xff]
  %v418 = vld [vmem:[%s1 + $0xc08] sm:$0xff]
  %v419 = vld [vmem:[%s1 + $0xc10] sm:$0xff]
  %v420 = vld [vmem:[%s1 + $0xc18] sm:$0xff]
  %v421 = vld [vmem:[%s1 + $0xc20] sm:$0xff]
  %v422 = vld [vmem:[%s1 + $0xc28] sm:$0xff]
  %v423 = vld [vmem:[%s1 + $0xc30] sm:$0xff]
  %v424 = vld [vmem:[%s1 + $0xc38] sm:$0xff]
  %v425 = vld [vmem:[%s1 + $0xc40] sm:$0xff]
  %v426 = vld [vmem:[%s1 + $0xc48] sm:$0xff]
  %v427 = vld [vmem:[%s1 + $0xc50] sm:$0xff]
  %v428 = vld [vmem:[%s1 + $0xc58] sm:$0xff]
  %v429 = vld [vmem:[%s1 + $0xc60] sm:$0xff]
  %v430 = vld [vmem:[%s1 + $0xc68] sm:$0xff]
  %v431 = vld [vmem:[%s1 + $0xc70] sm:$0xff]
  %v432 = vld [vmem:[%s1 + $0xc78] sm:$0xff]
  %v433 = vld [vmem:[%s1 + $0xc80] sm:$0xff]
  %v434 = vld [vmem:[%s1 + $0xc88] sm:$0xff]
  %v435 = vld [vmem:[%s1 + $0xc90] sm:$0xff]
  %v436 = vld [vmem:[%s1 + $0xc98] sm:$0xff]
  %v437 = vld [vmem:[%s1 + $0xca0] sm:$0xff]
  %v438 = vld [vmem:[%s1 + $0xca8] sm:$0xff]
  %v439 = vld [vmem:[%s1 + $0xcb0] sm:$0xff]
  %v440 = vld [vmem:[%s1 + $0xcb8] sm:$0xff]
  %v441 = vld [vmem:[%s1 + $0xcc0] sm:$0xff]
  %v442 = vld [vmem:[%s1 + $0xcc8] sm:$0xff]
  %v443 = vld [vmem:[%s1 + $0xcd0] sm:$0xff]
  %v444 = vld [vmem:[%s1 + $0xcd8] sm:$0xff]
  %v445 = vld [vmem:[%s1 + $0xce0] sm:$0xff]
  %v446 = vld [vmem:[%s1 + $0xce8] sm:$0xff]
  %v447 = vld [vmem:[%s1 + $0xcf0] sm:$0xff]
  %v448 = vld [vmem:[%s1 + $0xcf8] sm:$0xff]
  %v449 = vld [vmem:[%s1 + $0xd00] sm:$0xff]
  %v450 = vld [vmem:[%s1 + $0xd08] sm:$0xff]
  %v451 = vld [vmem:[%s1 + $0xd10] sm:$0xff]
  %v452 = vld [vmem:[%s1 + $0xd18] sm:$0xff]
  %v453 = vld [vmem:[%s1 + $0xd20] sm:$0xff]
  %v454 = vld [vmem:[%s1 + $0xd28] sm:$0xff]
  %v455 = vld [vmem:[%s1 + $0xd30] sm:$0xff]
  %v456 = vld [vmem:[%s1 + $0xd38] sm:$0xff]
  %v457 = vld [vmem:[%s1 + $0xd40] sm:$0xff]
  %v458 = vld [vmem:[%s1 + $0xd48] sm:$0xff]
  %v459 = vld [vmem:[%s1 + $0xd50] sm:$0xff]
  %v460 = vld [vmem:[%s1 + $0xd58] sm:$0xff]
  %v461 = vld [vmem:[%s1 + $0xd60] sm:$0xff]
  %v462 = vld [vmem:[%s1 + $0xd68] sm:$0xff]
  %v463 = vld [vmem:[%s1 + $0xd70] sm:$0xff]
  %v464 = vld [vmem:[%s1 + $0xd78] sm:$0xff]
  %v465 = vld [vmem:[%s1 + $0xd80] sm:$0xff]
  %v466 = vld [vmem:[%s1 + $0xd88] sm:$0xff]
  %v467 = vld [vmem:[%s1 + $0xd90] sm:$0xff]
  %v468 = vld [vmem:[%s1 + $0xd98] sm:$0xff]
  %v469 = vld [vmem:[%s1 + $0xda0] sm:$0xff]
  %v470 = vld [vmem:[%s1 + $0xda8] sm:$0xff]
  %v471 = vld [vmem:[%s1 + $0xdb0] sm:$0xff]
  %v472 = vld [vmem:[%s1 + $0xdb8] sm:$0xff]
  %v473 = vld [vmem:[%s1 + $0xdc0] sm:$0xff]
  %v474 = vld [vmem:[%s1 + $0xdc8] sm:$0xff]
  %v475 = vld [vmem:[%s1 + $0xdd0] sm:$0xff]
  %v476 = vld [vmem:[%s1 + $0xdd8] sm:$0xff]
  %v477 = vld [vmem:[%s1 + $0xde0] sm:$0xff]
  %v478 = vld [vmem:[%s1 + $0xde8] sm:$0xff]
  %v479 = vld [vmem:[%s1 + $0xdf0] sm:$0xff]
  %v480 = vld [vmem:[%s1 + $0xdf8] sm:$0xff]
  %v481 = vld [vmem:[%s2] sm:$0xf]
  %v483 = vlaneseq
  %v484 = vshrl.u32 %v483, 7
  %v485 = vsub.s32 0, %v484
  %v486 = vrot.slane %v481, %v485
  %v487 = vlaneseq
  %v488 = vshrl.u32 %v487, 7
  %v489 = vsub.s32 1, %v488
  %v490 = vrot.slane %v481, %v489
  %v491 = vlaneseq
  %v492 = vshrl.u32 %v491, 7
  %v493 = vsub.s32 2, %v492
  %v494 = vrot.slane %v481, %v493
  %v495 = vlaneseq
  %v496 = vshrl.u32 %v495, 7
  %v497 = vsub.s32 3, %v496
  %v498 = vrot.slane %v481, %v497
  %503 = vmatprep.subr.mxu0 %v34
  %504 = vmatpush1.msra.mxu0 %v33
  %505 = vmatprep.subr.mxu0 %v38
  %506 = vmatpush1.msra.mxu0 %v37
  %507 = vmatprep.subr.mxu0 %v42
  %508 = vmatpush1.msra.mxu0 %v41
  %509 = vmatprep.subr.mxu0 %v46
  %510 = vmatpush1.msra.mxu0 %v45
  %511 = vmatprep.subr.mxu0 %v50
  %512 = vmatpush1.msra.mxu0 %v49
  %513 = vmatprep.subr.mxu0 %v54
  %514 = vmatpush1.msra.mxu0 %v53
  %515 = vmatprep.subr.mxu0 %v58
  %516 = vmatpush1.msra.mxu0 %v57
  %517 = vmatprep.subr.mxu0 %v62
  %518 = vmatpush1.msra.mxu0 %v61
  %519 = vmatprep.subr.mxu0 %v66
  %520 = vmatpush1.msra.mxu0 %v65
  %521 = vmatprep.subr.mxu0 %v70
  %522 = vmatpush1.msra.mxu0 %v69
  %523 = vmatprep.subr.mxu0 %v74
  %524 = vmatpush1.msra.mxu0 %v73
  %525 = vmatprep.subr.mxu0 %v78
  %526 = vmatpush1.msra.mxu0 %v77
  %527 = vmatprep.subr.mxu0 %v82
  %528 = vmatpush1.msra.mxu0 %v81
  %529 = vmatprep.subr.mxu0 %v86
  %530 = vmatpush1.msra.mxu0 %v85
  %531 = vmatprep.subr.mxu0 %v90
  %532 = vmatpush1.msra.mxu0 %v89
  %533 = vmatprep.subr.mxu0 %v94
  %534 = vmatpush1.msra.mxu0 %v93
  %535 = vmatprep.subr.mxu0 %v98
  %536 = vmatpush1.msra.mxu0 %v97
  %537 = vmatprep.subr.mxu0 %v102
  %538 = vmatpush1.msra.mxu0 %v101
  %539 = vmatprep.subr.mxu0 %v106
  %540 = vmatpush1.msra.mxu0 %v105
  %541 = vmatprep.subr.mxu0 %v110
  %542 = vmatpush1.msra.mxu0 %v109
  %543 = vmatprep.subr.mxu0 %v114
  %544 = vmatpush1.msra.mxu0 %v113
  %545 = vmatprep.subr.mxu0 %v118
  %546 = vmatpush1.msra.mxu0 %v117
  %547 = vmatprep.subr.mxu0 %v122
  %548 = vmatpush1.msra.mxu0 %v121
  %549 = vmatprep.subr.mxu0 %v126
  %550 = vmatpush1.msra.mxu0 %v125
  %551 = vmatprep.subr.mxu0 %v130
  %552 = vmatpush1.msra.mxu0 %v129
  %553 = vmatprep.subr.mxu0 %v134
  %554 = vmatpush1.msra.mxu0 %v133
  %555 = vmatprep.subr.mxu0 %v138
  %556 = vmatpush1.msra.mxu0 %v137
  %557 = vmatprep.subr.mxu0 %v142
  %558 = vmatpush1.msra.mxu0 %v141
  %559 = vmatprep.subr.mxu0 %v146
  %560 = vmatpush1.msra.mxu0 %v145
  %561 = vmatprep.subr.mxu0 %v150
  %562 = vmatpush1.msra.mxu0 %v149
  %563 = vmatprep.subr.mxu0 %v154
  %564 = vmatpush1.msra.mxu0 %v153
  %565 = vmatprep.subr.mxu0 %v158
  %566 = vmatpush1.msra.mxu0 %v157
  %567 = vmatprep.mubr.f32.mxu0 %v27
  %568 = vmatmul.mubr.f32.gmra.mrb[0].mxu0 %v26
  %v569 = vpop.f32.mrb[0].mxu0
  %v570 = vadd.f32 %v486, %v569
  %v571 = vpop.f32.mrb[0].mxu0
  %v572 = vadd.f32 %v490, %v571
  %573 = vdwg.mxu0
  %574 = vmatprep.subr.mxu0 %v162
  %575 = vmatpush1.msra.mxu0 %v161
  %576 = vmatprep.subr.mxu0 %v166
  %577 = vmatpush1.msra.mxu0 %v165
  %578 = vmatprep.subr.mxu0 %v170
  %579 = vmatpush1.msra.mxu0 %v169
  %580 = vmatprep.subr.mxu0 %v174
  %581 = vmatpush1.msra.mxu0 %v173
  %582 = vmatprep.subr.mxu0 %v178
  %583 = vmatpush1.msra.mxu0 %v177
  %584 = vmatprep.subr.mxu0 %v182
  %585 = vmatpush1.msra.mxu0 %v181
  %586 = vmatprep.subr.mxu0 %v186
  %587 = vmatpush1.msra.mxu0 %v185
  %588 = vmatprep.subr.mxu0 %v190
  %589 = vmatpush1.msra.mxu0 %v189
  %590 = vmatprep.subr.mxu0 %v194
  %591 = vmatpush1.msra.mxu0 %v193
  %592 = vmatprep.subr.mxu0 %v198
  %593 = vmatpush1.msra.mxu0 %v197
  %594 = vmatprep.subr.mxu0 %v202
  %595 = vmatpush1.msra.mxu0 %v201
  %596 = vmatprep.subr.mxu0 %v206
  %597 = vmatpush1.msra.mxu0 %v205
  %598 = vmatprep.subr.mxu0 %v210
  %599 = vmatpush1.msra.mxu0 %v209
  %600 = vmatprep.subr.mxu0 %v214
  %601 = vmatpush1.msra.mxu0 %v213
  %602 = vmatprep.subr.mxu0 %v218
  %603 = vmatpush1.msra.mxu0 %v217
  %604 = vmatprep.subr.mxu0 %v222
  %605 = vmatpush1.msra.mxu0 %v221
  %606 = vmatprep.subr.mxu0 %v226
  %607 = vmatpush1.msra.mxu0 %v225
  %608 = vmatprep.subr.mxu0 %v230
  %609 = vmatpush1.msra.mxu0 %v229
  %610 = vmatprep.subr.mxu0 %v234
  %611 = vmatpush1.msra.mxu0 %v233
  %612 = vmatprep.subr.mxu0 %v238
  %613 = vmatpush1.msra.mxu0 %v237
  %614 = vmatprep.subr.mxu0 %v242
  %615 = vmatpush1.msra.mxu0 %v241
  %616 = vmatprep.subr.mxu0 %v246
  %617 = vmatpush1.msra.mxu0 %v245
  %618 = vmatprep.subr.mxu0 %v250
  %619 = vmatpush1.msra.mxu0 %v249
  %620 = vmatprep.subr.mxu0 %v254
  %621 = vmatpush1.msra.mxu0 %v253
  %622 = vmatprep.subr.mxu0 %v258
  %623 = vmatpush1.msra.mxu0 %v257
  %624 = vmatprep.subr.mxu0 %v262
  %625 = vmatpush1.msra.mxu0 %v261
  %626 = vmatprep.subr.mxu0 %v266
  %627 = vmatpush1.msra.mxu0 %v265
  %628 = vmatprep.subr.mxu0 %v270
  %629 = vmatpush1.msra.mxu0 %v269
  %630 = vmatprep.subr.mxu0 %v274
  %631 = vmatpush1.msra.mxu0 %v273
  %632 = vmatprep.subr.mxu0 %v278
  %633 = vmatpush1.msra.mxu0 %v277
  %634 = vmatprep.subr.mxu0 %v282
  %635 = vmatpush1.msra.mxu0 %v281
  %636 = vmatprep.subr.mxu0 %v286
  %637 = vmatpush1.msra.mxu0 %v285
  %638 = vmatprep.mubr.f32.mxu0 %v29
  %639 = vmatmul.mubr.f32.gmra.mrb[0].mxu0 %v28
  %v640 = vpop.f32.mrb[0].mxu0
  %v641 = vadd.f32 %v570, %v640
  %v642 = vpop.f32.mrb[0].mxu0
  %v643 = vadd.f32 %v572, %v642
  %644 = vdwg.mxu0
  %645 = vmatprep.subr.mxu0 %v290
  %646 = vmatpush1.msra.mxu0 %v289
  %647 = vmatprep.subr.mxu0 %v294
  %648 = vmatpush1.msra.mxu0 %v293
  %649 = vmatprep.subr.mxu0 %v298
  %650 = vmatpush1.msra.mxu0 %v297
  %651 = vmatprep.subr.mxu0 %v302
  %652 = vmatpush1.msra.mxu0 %v301
  %653 = vmatprep.subr.mxu0 %v306
  %654 = vmatpush1.msra.mxu0 %v305
  %655 = vmatprep.subr.mxu0 %v310
  %656 = vmatpush1.msra.mxu0 %v309
  %657 = vmatprep.subr.mxu0 %v314
  %658 = vmatpush1.msra.mxu0 %v313
  %659 = vmatprep.subr.mxu0 %v318
  %660 = vmatpush1.msra.mxu0 %v317
  %661 = vmatprep.subr.mxu0 %v322
  %662 = vmatpush1.msra.mxu0 %v321
  %663 = vmatprep.subr.mxu0 %v326
  %664 = vmatpush1.msra.mxu0 %v325
  %665 = vmatprep.subr.mxu0 %v330
  %666 = vmatpush1.msra.mxu0 %v329
  %667 = vmatprep.subr.mxu0 %v334
  %668 = vmatpush1.msra.mxu0 %v333
  %669 = vmatprep.subr.mxu0 %v338
  %670 = vmatpush1.msra.mxu0 %v337
  %671 = vmatprep.subr.mxu0 %v342
  %672 = vmatpush1.msra.mxu0 %v341
  %673 = vmatprep.subr.mxu0 %v346
  %674 = vmatpush1.msra.mxu0 %v345
  %675 = vmatprep.subr.mxu0 %v350
  %676 = vmatpush1.msra.mxu0 %v349
  %677 = vmatprep.subr.mxu0 %v354
  %678 = vmatpush1.msra.mxu0 %v353
  %679 = vmatprep.subr.mxu0 %v358
  %680 = vmatpush1.msra.mxu0 %v357
  %681 = vmatprep.subr.mxu0 %v362
  %682 = vmatpush1.msra.mxu0 %v361
  %683 = vmatprep.subr.mxu0 %v366
  %684 = vmatpush1.msra.mxu0 %v365
  %685 = vmatprep.subr.mxu0 %v370
  %686 = vmatpush1.msra.mxu0 %v369
  %687 = vmatprep.subr.mxu0 %v374
  %688 = vmatpush1.msra.mxu0 %v373
  %689 = vmatprep.subr.mxu0 %v378
  %690 = vmatpush1.msra.mxu0 %v377
  %691 = vmatprep.subr.mxu0 %v382
  %692 = vmatpush1.msra.mxu0 %v381
  %693 = vmatprep.subr.mxu0 %v386
  %694 = vmatpush1.msra.mxu0 %v385
  %695 = vmatprep.subr.mxu0 %v390
  %696 = vmatpush1.msra.mxu0 %v389
  %697 = vmatprep.subr.mxu0 %v394
  %698 = vmatpush1.msra.mxu0 %v393
  %699 = vmatprep.subr.mxu0 %v398
  %700 = vmatpush1.msra.mxu0 %v397
  %701 = vmatprep.subr.mxu0 %v402
  %702 = vmatpush1.msra.mxu0 %v401
  %703 = vmatprep.subr.mxu0 %v406
  %704 = vmatpush1.msra.mxu0 %v405
  %705 = vmatprep.subr.mxu0 %v410
  %706 = vmatpush1.msra.mxu0 %v409
  %707 = vmatprep.subr.mxu0 %v414
  %708 = vmatpush1.msra.mxu0 %v413
  %709 = vmatprep.mubr.f32.mxu0 %v31
  %710 = vmatmul.mubr.f32.gmra.mrb[0].mxu0 %v30
  %v711 = vpop.f32.mrb[0].mxu0
  %v712 = vadd.f32 %v641, %v711
  %v713 = vpop.f32.mrb[0].mxu0
  %v714 = vadd.f32 %v643, %v713
  %715 = vdwg.mxu0
  %716 = vmatprep.subr.mxu0 %v418
  %717 = vmatpush1.msra.mxu0 %v417
  %718 = vmatprep.subr.mxu0 %v422
  %719 = vmatpush1.msra.mxu0 %v421
  %720 = vmatprep.subr.mxu0 %v426
  %721 = vmatpush1.msra.mxu0 %v425
  %722 = vmatprep.subr.mxu0 %v430
  %723 = vmatpush1.msra.mxu0 %v429
  %724 = vmatprep.subr.mxu0 %v434
  %725 = vmatpush1.msra.mxu0 %v433
  %726 = vmatprep.subr.mxu0 %v438
  %727 = vmatpush1.msra.mxu0 %v437
  %728 = vmatprep.subr.mxu0 %v442
  %729 = vmatpush1.msra.mxu0 %v441
  %730 = vmatprep.subr.mxu0 %v446
  %731 = vmatpush1.msra.mxu0 %v445
  %732 = vmatprep.subr.mxu0 %v450
  %733 = vmatpush1.msra.mxu0 %v449
  %734 = vmatprep.subr.mxu0 %v454
  %735 = vmatpush1.msra.mxu0 %v453
  %736 = vmatprep.subr.mxu0 %v458
  %737 = vmatpush1.msra.mxu0 %v457
  %738 = vmatprep.subr.mxu0 %v462
  %739 = vmatpush1.msra.mxu0 %v461
  %740 = vmatprep.subr.mxu0 %v466
  %741 = vmatpush1.msra.mxu0 %v465
  %742 = vmatprep.subr.mxu0 %v470
  %743 = vmatpush1.msra.mxu0 %v469
  %744 = vmatprep.subr.mxu0 %v474
  %745 = vmatpush1.msra.mxu0 %v473
  %746 = vmatprep.subr.mxu0 %v478
  %747 = vmatpush1.msra.mxu0 %v477
  %748 = vmatprep.subr.mxu0 0.0
  %749 = vmatpush1.msra.mxu0 0.0
  %750 = vmatprep.subr.mxu0 0.0
  %751 = vmatpush1.msra.mxu0 0.0
  %752 = vmatprep.subr.mxu0 0.0
  %753 = vmatpush1.msra.mxu0 0.0
  %754 = vmatprep.subr.mxu0 0.0
  %755 = vmatpush1.msra.mxu0 0.0
  %756 = vmatprep.subr.mxu0 0.0
  %757 = vmatpush1.msra.mxu0 0.0
  %758 = vmatprep.subr.mxu0 0.0
  %759 = vmatpush1.msra.mxu0 0.0
  %760 = vmatprep.subr.mxu0 0.0
  %761 = vmatpush1.msra.mxu0 0.0
  %762 = vmatprep.subr.mxu0 0.0
  %763 = vmatpush1.msra.mxu0 0.0
  %764 = vmatprep.subr.mxu0 0.0
  %765 = vmatpush1.msra.mxu0 0.0
  %766 = vmatprep.subr.mxu0 0.0
  %767 = vmatpush1.msra.mxu0 0.0
  %768 = vmatprep.subr.mxu0 0.0
  %769 = vmatpush1.msra.mxu0 0.0
  %770 = vmatprep.subr.mxu0 0.0
  %771 = vmatpush1.msra.mxu0 0.0
  %772 = vmatprep.subr.mxu0 0.0
  %773 = vmatpush1.msra.mxu0 0.0
  %774 = vmatprep.subr.mxu0 0.0
  %775 = vmatpush1.msra.mxu0 0.0
  %776 = vmatprep.subr.mxu0 0.0
  %777 = vmatpush1.msra.mxu0 0.0
  %778 = vmatprep.subr.mxu0 0.0
  %779 = vmatpush1.msra.mxu0 0.0
  %780 = vmatprep.mubr.f32.mxu0 0.0
  %781 = vmatmul.mubr.f32.gmra.mrb[0].mxu0 %v32
  %v782 = vpop.f32.mrb[0].mxu0
  %v783 = vadd.f32 %v712, %v782
  %v784 = vpop.f32.mrb[0].mxu0
  %v785 = vadd.f32 %v714, %v784
  %786 = vdwg.mxu0
  %787 = vmatprep.subr.mxu0 %v36
  %788 = vmatpush1.msra.mxu0 %v35
  %789 = vmatprep.subr.mxu0 %v40
  %790 = vmatpush1.msra.mxu0 %v39
  %791 = vmatprep.subr.mxu0 %v44
  %792 = vmatpush1.msra.mxu0 %v43
  %793 = vmatprep.subr.mxu0 %v48
  %794 = vmatpush1.msra.mxu0 %v47
  %795 = vmatprep.subr.mxu0 %v52
  %796 = vmatpush1.msra.mxu0 %v51
  %797 = vmatprep.subr.mxu0 %v56
  %798 = vmatpush1.msra.mxu0 %v55
  %799 = vmatprep.subr.mxu0 %v60
  %800 = vmatpush1.msra.mxu0 %v59
  %801 = vmatprep.subr.mxu0 %v64
  %802 = vmatpush1.msra.mxu0 %v63
  %803 = vmatprep.subr.mxu0 %v68
  %804 = vmatpush1.msra.mxu0 %v67
  %805 = vmatprep.subr.mxu0 %v72
  %806 = vmatpush1.msra.mxu0 %v71
  %807 = vmatprep.subr.mxu0 %v76
  %808 = vmatpush1.msra.mxu0 %v75
  %809 = vmatprep.subr.mxu0 %v80
  %810 = vmatpush1.msra.mxu0 %v79
  %811 = vmatprep.subr.mxu0 %v84
  %812 = vmatpush1.msra.mxu0 %v83
  %813 = vmatprep.subr.mxu0 %v88
  %814 = vmatpush1.msra.mxu0 %v87
  %815 = vmatprep.subr.mxu0 %v92
  %816 = vmatpush1.msra.mxu0 %v91
  %817 = vmatprep.subr.mxu0 %v96
  %818 = vmatpush1.msra.mxu0 %v95
  %819 = vmatprep.subr.mxu0 %v100
  %820 = vmatpush1.msra.mxu0 %v99
  %821 = vmatprep.subr.mxu0 %v104
  %822 = vmatpush1.msra.mxu0 %v103
  %823 = vmatprep.subr.mxu0 %v108
  %824 = vmatpush1.msra.mxu0 %v107
  %825 = vmatprep.subr.mxu0 %v112
  %826 = vmatpush1.msra.mxu0 %v111
  %827 = vmatprep.subr.mxu0 %v116
  %828 = vmatpush1.msra.mxu0 %v115
  %829 = vmatprep.subr.mxu0 %v120
  %830 = vmatpush1.msra.mxu0 %v119
  %831 = vmatprep.subr.mxu0 %v124
  %832 = vmatpush1.msra.mxu0 %v123
  %833 = vmatprep.subr.mxu0 %v128
  %834 = vmatpush1.msra.mxu0 %v127
  %835 = vmatprep.subr.mxu0 %v132
  %836 = vmatpush1.msra.mxu0 %v131
  %837 = vmatprep.subr.mxu0 %v136
  %838 = vmatpush1.msra.mxu0 %v135
  %839 = vmatprep.subr.mxu0 %v140
  %840 = vmatpush1.msra.mxu0 %v139
  %841 = vmatprep.subr.mxu0 %v144
  %842 = vmatpush1.msra.mxu0 %v143
  %843 = vmatprep.subr.mxu0 %v148
  %844 = vmatpush1.msra.mxu0 %v147
  %845 = vmatprep.subr.mxu0 %v152
  %846 = vmatpush1.msra.mxu0 %v151
  %847 = vmatprep.subr.mxu0 %v156
  %848 = vmatpush1.msra.mxu0 %v155
  %849 = vmatprep.subr.mxu0 %v160
  %850 = vmatpush1.msra.mxu0 %v159
  %851 = vmatprep.mubr.f32.mxu0 %v27
  %852 = vmatmul.mubr.f32.gmra.mrb[0].mxu0 %v26
  %v853 = vpop.f32.mrb[0].mxu0
  %v854 = vadd.f32 %v494, %v853
  %v855 = vpop.f32.mrb[0].mxu0
  %v856 = vadd.f32 %v498, %v855
  %857 = vdwg.mxu0
  %858 = vmatprep.subr.mxu0 %v164
  %859 = vmatpush1.msra.mxu0 %v163
  %860 = vmatprep.subr.mxu0 %v168
  %861 = vmatpush1.msra.mxu0 %v167
  %862 = vmatprep.subr.mxu0 %v172
  %863 = vmatpush1.msra.mxu0 %v171
  %864 = vmatprep.subr.mxu0 %v176
  %865 = vmatpush1.msra.mxu0 %v175
  %866 = vmatprep.subr.mxu0 %v180
  %867 = vmatpush1.msra.mxu0 %v179
  %868 = vmatprep.subr.mxu0 %v184
  %869 = vmatpush1.msra.mxu0 %v183
  %870 = vmatprep.subr.mxu0 %v188
  %871 = vmatpush1.msra.mxu0 %v187
  %872 = vmatprep.subr.mxu0 %v192
  %873 = vmatpush1.msra.mxu0 %v191
  %874 = vmatprep.subr.mxu0 %v196
  %875 = vmatpush1.msra.mxu0 %v195
  %876 = vmatprep.subr.mxu0 %v200
  %877 = vmatpush1.msra.mxu0 %v199
  %878 = vmatprep.subr.mxu0 %v204
  %879 = vmatpush1.msra.mxu0 %v203
  %880 = vmatprep.subr.mxu0 %v208
  %881 = vmatpush1.msra.mxu0 %v207
  %882 = vmatprep.subr.mxu0 %v212
  %883 = vmatpush1.msra.mxu0 %v211
  %884 = vmatprep.subr.mxu0 %v216
  %885 = vmatpush1.msra.mxu0 %v215
  %886 = vmatprep.subr.mxu0 %v220
  %887 = vmatpush1.msra.mxu0 %v219
  %888 = vmatprep.subr.mxu0 %v224
  %889 = vmatpush1.msra.mxu0 %v223
  %890 = vmatprep.subr.mxu0 %v228
  %891 = vmatpush1.msra.mxu0 %v227
  %892 = vmatprep.subr.mxu0 %v232
  %893 = vmatpush1.msra.mxu0 %v231
  %894 = vmatprep.subr.mxu0 %v236
  %895 = vmatpush1.msra.mxu0 %v235
  %896 = vmatprep.subr.mxu0 %v240
  %897 = vmatpush1.msra.mxu0 %v239
  %898 = vmatprep.subr.mxu0 %v244
  %899 = vmatpush1.msra.mxu0 %v243
  %900 = vmatprep.subr.mxu0 %v248
  %901 = vmatpush1.msra.mxu0 %v247
  %902 = vmatprep.subr.mxu0 %v252
  %903 = vmatpush1.msra.mxu0 %v251
  %904 = vmatprep.subr.mxu0 %v256
  %905 = vmatpush1.msra.mxu0 %v255
  %906 = vmatprep.subr.mxu0 %v260
  %907 = vmatpush1.msra.mxu0 %v259
  %908 = vmatprep.subr.mxu0 %v264
  %909 = vmatpush1.msra.mxu0 %v263
  %910 = vmatprep.subr.mxu0 %v268
  %911 = vmatpush1.msra.mxu0 %v267
  %912 = vmatprep.subr.mxu0 %v272
  %913 = vmatpush1.msra.mxu0 %v271
  %914 = vmatprep.subr.mxu0 %v276
  %915 = vmatpush1.msra.mxu0 %v275
  %916 = vmatprep.subr.mxu0 %v280
  %917 = vmatpush1.msra.mxu0 %v279
  %918 = vmatprep.subr.mxu0 %v284
  %919 = vmatpush1.msra.mxu0 %v283
  %920 = vmatprep.subr.mxu0 %v288
  %921 = vmatpush1.msra.mxu0 %v287
  %922 = vmatprep.mubr.f32.mxu0 %v29
  %923 = vmatmul.mubr.f32.gmra.mrb[0].mxu0 %v28
  %v924 = vpop.f32.mrb[0].mxu0
  %v925 = vadd.f32 %v854, %v924
  %v926 = vpop.f32.mrb[0].mxu0
  %v927 = vadd.f32 %v856, %v926
  %928 = vdwg.mxu0
  %929 = vmatprep.subr.mxu0 %v292
  %930 = vmatpush1.msra.mxu0 %v291
  %931 = vmatprep.subr.mxu0 %v296
  %932 = vmatpush1.msra.mxu0 %v295
  %933 = vmatprep.subr.mxu0 %v300
  %934 = vmatpush1.msra.mxu0 %v299
  %935 = vmatprep.subr.mxu0 %v304
  %936 = vmatpush1.msra.mxu0 %v303
  %937 = vmatprep.subr.mxu0 %v308
  %938 = vmatpush1.msra.mxu0 %v307
  %939 = vmatprep.subr.mxu0 %v312
  %940 = vmatpush1.msra.mxu0 %v311
  %941 = vmatprep.subr.mxu0 %v316
  %942 = vmatpush1.msra.mxu0 %v315
  %943 = vmatprep.subr.mxu0 %v320
  %944 = vmatpush1.msra.mxu0 %v319
  %945 = vmatprep.subr.mxu0 %v324
  %946 = vmatpush1.msra.mxu0 %v323
  %947 = vmatprep.subr.mxu0 %v328
  %948 = vmatpush1.msra.mxu0 %v327
  %949 = vmatprep.subr.mxu0 %v332
  %950 = vmatpush1.msra.mxu0 %v331
  %951 = vmatprep.subr.mxu0 %v336
  %952 = vmatpush1.msra.mxu0 %v335
  %953 = vmatprep.subr.mxu0 %v340
  %954 = vmatpush1.msra.mxu0 %v339
  %955 = vmatprep.subr.mxu0 %v344
  %956 = vmatpush1.msra.mxu0 %v343
  %957 = vmatprep.subr.mxu0 %v348
  %958 = vmatpush1.msra.mxu0 %v347
  %959 = vmatprep.subr.mxu0 %v352
  %960 = vmatpush1.msra.mxu0 %v351
  %961 = vmatprep.subr.mxu0 %v356
  %962 = vmatpush1.msra.mxu0 %v355
  %963 = vmatprep.subr.mxu0 %v360
  %964 = vmatpush1.msra.mxu0 %v359
  %965 = vmatprep.subr.mxu0 %v364
  %966 = vmatpush1.msra.mxu0 %v363
  %967 = vmatprep.subr.mxu0 %v368
  %968 = vmatpush1.msra.mxu0 %v367
  %969 = vmatprep.subr.mxu0 %v372
  %970 = vmatpush1.msra.mxu0 %v371
  %971 = vmatprep.subr.mxu0 %v376
  %972 = vmatpush1.msra.mxu0 %v375
  %973 = vmatprep.subr.mxu0 %v380
  %974 = vmatpush1.msra.mxu0 %v379
  %975 = vmatprep.subr.mxu0 %v384
  %976 = vmatpush1.msra.mxu0 %v383
  %977 = vmatprep.subr.mxu0 %v388
  %978 = vmatpush1.msra.mxu0 %v387
  %979 = vmatprep.subr.mxu0 %v392
  %980 = vmatpush1.msra.mxu0 %v391
  %981 = vmatprep.subr.mxu0 %v396
  %982 = vmatpush1.msra.mxu0 %v395
  %983 = vmatprep.subr.mxu0 %v400
  %984 = vmatpush1.msra.mxu0 %v399
  %985 = vmatprep.subr.mxu0 %v404
  %986 = vmatpush1.msra.mxu0 %v403
  %987 = vmatprep.subr.mxu0 %v408
  %988 = vmatpush1.msra.mxu0 %v407
  %989 = vmatprep.subr.mxu0 %v412
  %990 = vmatpush1.msra.mxu0 %v411
  %991 = vmatprep.subr.mxu0 %v416
  %992 = vmatpush1.msra.mxu0 %v415
  %993 = vmatprep.mubr.f32.mxu0 %v31
  %994 = vmatmul.mubr.f32.gmra.mrb[0].mxu0 %v30
  %v995 = vpop.f32.mrb[0].mxu0
  %v996 = vadd.f32 %v925, %v995
  %v997 = vpop.f32.mrb[0].mxu0
  %v998 = vadd.f32 %v927, %v997
  %999 = vdwg.mxu0
  %1000 = vmatprep.subr.mxu0 %v420
  %1001 = vmatpush1.msra.mxu0 %v419
  %1002 = vmatprep.subr.mxu0 %v424
  %1003 = vmatpush1.msra.mxu0 %v423
  %1004 = vmatprep.subr.mxu0 %v428
  %1005 = vmatpush1.msra.mxu0 %v427
  %1006 = vmatprep.subr.mxu0 %v432
  %1007 = vmatpush1.msra.mxu0 %v431
  %1008 = vmatprep.subr.mxu0 %v436
  %1009 = vmatpush1.msra.mxu0 %v435
  %1010 = vmatprep.subr.mxu0 %v440
  %1011 = vmatpush1.msra.mxu0 %v439
  %1012 = vmatprep.subr.mxu0 %v444
  %1013 = vmatpush1.msra.mxu0 %v443
  %1014 = vmatprep.subr.mxu0 %v448
  %1015 = vmatpush1.msra.mxu0 %v447
  %1016 = vmatprep.subr.mxu0 %v452
  %1017 = vmatpush1.msra.mxu0 %v451
  %1018 = vmatprep.subr.mxu0 %v456
  %1019 = vmatpush1.msra.mxu0 %v455
  %1020 = vmatprep.subr.mxu0 %v460
  %1021 = vmatpush1.msra.mxu0 %v459
  %1022 = vmatprep.subr.mxu0 %v464
  %1023 = vmatpush1.msra.mxu0 %v463
  %1024 = vmatprep.subr.mxu0 %v468
  %1025 = vmatpush1.msra.mxu0 %v467
  %1026 = vmatprep.subr.mxu0 %v472
  %1027 = vmatpush1.msra.mxu0 %v471
  %1028 = vmatprep.subr.mxu0 %v476
  %1029 = vmatpush1.msra.mxu0 %v475
  %1030 = vmatprep.subr.mxu0 %v480
  %1031 = vmatpush1.msra.mxu0 %v479
  %1032 = vmatprep.subr.mxu0 0.0
  %1033 = vmatpush1.msra.mxu0 0.0
  %1034 = vmatprep.subr.mxu0 0.0
  %1035 = vmatpush1.msra.mxu0 0.0
  %1036 = vmatprep.subr.mxu0 0.0
  %1037 = vmatpush1.msra.mxu0 0.0
  %1038 = vmatprep.subr.mxu0 0.0
  %1039 = vmatpush1.msra.mxu0 0.0
  %1040 = vmatprep.subr.mxu0 0.0
  %1041 = vmatpush1.msra.mxu0 0.0
  %1042 = vmatprep.subr.mxu0 0.0
  %1043 = vmatpush1.msra.mxu0 0.0
  %1044 = vmatprep.subr.mxu0 0.0
  %1045 = vmatpush1.msra.mxu0 0.0
  %1046 = vmatprep.subr.mxu0 0.0
  %1047 = vmatpush1.msra.mxu0 0.0
  %1048 = vmatprep.subr.mxu0 0.0
  %1049 = vmatpush1.msra.mxu0 0.0
  %1050 = vmatprep.subr.mxu0 0.0
  %1051 = vmatpush1.msra.mxu0 0.0
  %1052 = vmatprep.subr.mxu0 0.0
  %1053 = vmatpush1.msra.mxu0 0.0
  %1054 = vmatprep.subr.mxu0 0.0
  %1055 = vmatpush1.msra.mxu0 0.0
  %1056 = vmatprep.subr.mxu0 0.0
  %1057 = vmatpush1.msra.mxu0 0.0
  %1058 = vmatprep.subr.mxu0 0.0
  %1059 = vmatpush1.msra.mxu0 0.0
  %1060 = vmatprep.subr.mxu0 0.0
  %1061 = vmatpush1.msra.mxu0 0.0
  %1062 = vmatprep.subr.mxu0 0.0
  %1063 = vmatpush1.msra.mxu0 0.0
  %1064 = vmatprep.mubr.f32.mxu0 0.0
  %1065 = vmatmul.mubr.f32.gmra.mrb[0].mxu0 %v32
  %v1066 = vpop.f32.mrb[0].mxu0
  %v1067 = vadd.f32 %v996, %v1066
  %v1068 = vpop.f32.mrb[0].mxu0
  %v1069 = vadd.f32 %v998, %v1068
  %1070 = vdwg.mxu0
  %v1071 = vmax.f32 %v783, 0.0
  %v1072 = vmax.f32 %v785, 0.0
  %v1073 = vmax.f32 %v1067, 0.0
  %v1074 = vmax.f32 %v1069, 0.0
  %v1075 = vld [vmem:[%s3] sm:$0xff]
  %v1076 = vld [vmem:[%s3 + $0x8] sm:$0xff]
  %v1077 = vld [vmem:[%s3 + $0x10] sm:$0xff]
  %v1078 = vld [vmem:[%s3 + $0x18] sm:$0xff]
  %v1079 = vld [vmem:[%s3 + $0x20] sm:$0xff]
  %v1080 = vld [vmem:[%s3 + $0x28] sm:$0xff]
  %v1081 = vld [vmem:[%s3 + $0x30] sm:$0xff]
  %v1082 = vld [vmem:[%s3 + $0x38] sm:$0xff]
  %v1083 = vld [vmem:[%s3 + $0x40] sm:$0xff]
  %v1084 = vld [vmem:[%s3 + $0x48] sm:$0xff]
  %v1085 = vld [vmem:[%s3 + $0x50] sm:$0xff]
  %v1086 = vld [vmem:[%s3 + $0x58] sm:$0xff]
  %v1087 = vld [vmem:[%s3 + $0x60] sm:$0xff]
  %v1088 = vld [vmem:[%s3 + $0x68] sm:$0xff]
  %v1089 = vld [vmem:[%s3 + $0x70] sm:$0xff]
  %v1090 = vld [vmem:[%s3 + $0x78] sm:$0xff]
  %v1091 = vld [vmem:[%s3 + $0x80] sm:$0xff]
  %v1092 = vld [vmem:[%s3 + $0x88] sm:$0xff]
  %v1093 = vld [vmem:[%s3 + $0x90] sm:$0xff]
  %v1094 = vld [vmem:[%s3 + $0x98] sm:$0xff]
  %v1095 = vld [vmem:[%s3 + $0xa0] sm:$0xff]
  %v1096 = vld [vmem:[%s3 + $0xa8] sm:$0xff]
  %v1097 = vld [vmem:[%s3 + $0xb0] sm:$0xff]
  %v1098 = vld [vmem:[%s3 + $0xb8] sm:$0xff]
  %v1099 = vld [vmem:[%s3 + $0xc0] sm:$0xff]
  %v1100 = vld [vmem:[%s3 + $0xc8] sm:$0xff]
  %v1101 = vld [vmem:[%s3 + $0xd0] sm:$0xff]
  %v1102 = vld [vmem:[%s3 + $0xd8] sm:$0xff]
  %v1103 = vld [vmem:[%s3 + $0xe0] sm:$0xff]
  %v1104 = vld [vmem:[%s3 + $0xe8] sm:$0xff]
  %v1105 = vld [vmem:[%s3 + $0xf0] sm:$0xff]
  %v1106 = vld [vmem:[%s3 + $0xf8] sm:$0xff]
  %v1107 = vld [vmem:[%s3 + $0x100] sm:$0xff]
  %v1108 = vld [vmem:[%s3 + $0x108] sm:$0xff]
  %v1109 = vld [vmem:[%s3 + $0x110] sm:$0xff]
  %v1110 = vld [vmem:[%s3 + $0x118] sm:$0xff]
  %v1111 = vld [vmem:[%s3 + $0x120] sm:$0xff]
  %v1112 = vld [vmem:[%s3 + $0x128] sm:$0xff]
  %v1113 = vld [vmem:[%s3 + $0x130] sm:$0xff]
  %v1114 = vld [vmem:[%s3 + $0x138] sm:$0xff]
  %v1115 = vld [vmem:[%s3 + $0x140] sm:$0xff]
  %v1116 = vld [vmem:[%s3 + $0x148] sm:$0xff]
  %v1117 = vld [vmem:[%s3 + $0x150] sm:$0xff]
  %v1118 = vld [vmem:[%s3 + $0x158] sm:$0xff]
  %v1119 = vld [vmem:[%s3 + $0x160] sm:$0xff]
  %v1120 = vld [vmem:[%s3 + $0x168] sm:$0xff]
  %v1121 = vld [vmem:[%s3 + $0x170] sm:$0xff]
  %v1122 = vld [vmem:[%s3 + $0x178] sm:$0xff]
  %v1123 = vld [vmem:[%s3 + $0x180] sm:$0xff]
  %v1124 = vld [vmem:[%s3 + $0x188] sm:$0xff]
  %v1125 = vld [vmem:[%s3 + $0x190] sm:$0xff]
  %v1126 = vld [vmem:[%s3 + $0x198] sm:$0xff]
  %v1127 = vld [vmem:[%s3 + $0x1a0] sm:$0xff]
  %v1128 = vld [vmem:[%s3 + $0x1a8] sm:$0xff]
  %v1129 = vld [vmem:[%s3 + $0x1b0] sm:$0xff]
  %v1130 = vld [vmem:[%s3 + $0x1b8] sm:$0xff]
  %v1131 = vld [vmem:[%s3 + $0x1c0] sm:$0xff]
  %v1132 = vld [vmem:[%s3 + $0x1c8] sm:$0xff]
  %v1133 = vld [vmem:[%s3 + $0x1d0] sm:$0xff]
  %v1134 = vld [vmem:[%s3 + $0x1d8] sm:$0xff]
  %v1135 = vld [vmem:[%s3 + $0x1e0] sm:$0xff]
  %v1136 = vld [vmem:[%s3 + $0x1e8] sm:$0xff]
  %v1137 = vld [vmem:[%s3 + $0x1f0] sm:$0xff]
  %v1138 = vld [vmem:[%s3 + $0x1f8] sm:$0xff]
  %v1139 = vld [vmem:[%s3 + $0x200] sm:$0xff]
  %v1140 = vld [vmem:[%s3 + $0x208] sm:$0xff]
  %v1141 = vld [vmem:[%s3 + $0x210] sm:$0xff]
  %v1142 = vld [vmem:[%s3 + $0x218] sm:$0xff]
  %v1143 = vld [vmem:[%s3 + $0x220] sm:$0xff]
  %v1144 = vld [vmem:[%s3 + $0x228] sm:$0xff]
  %v1145 = vld [vmem:[%s3 + $0x230] sm:$0xff]
  %v1146 = vld [vmem:[%s3 + $0x238] sm:$0xff]
  %v1147 = vld [vmem:[%s3 + $0x240] sm:$0xff]
  %v1148 = vld [vmem:[%s3 + $0x248] sm:$0xff]
  %v1149 = vld [vmem:[%s3 + $0x250] sm:$0xff]
  %v1150 = vld [vmem:[%s3 + $0x258] sm:$0xff]
  %v1151 = vld [vmem:[%s3 + $0x260] sm:$0xff]
  %v1152 = vld [vmem:[%s3 + $0x268] sm:$0xff]
  %v1153 = vld [vmem:[%s3 + $0x270] sm:$0xff]
  %v1154 = vld [vmem:[%s3 + $0x278] sm:$0xff]
  %v1155 = vld [vmem:[%s3 + $0x280] sm:$0xff]
  %v1156 = vld [vmem:[%s3 + $0x288] sm:$0xff]
  %v1157 = vld [vmem:[%s3 + $0x290] sm:$0xff]
  %v1158 = vld [vmem:[%s3 + $0x298] sm:$0xff]
  %v1159 = vld [vmem:[%s3 + $0x2a0] sm:$0xff]
  %v1160 = vld [vmem:[%s3 + $0x2a8] sm:$0xff]
  %v1161 = vld [vmem:[%s3 + $0x2b0] sm:$0xff]
  %v1162 = vld [vmem:[%s3 + $0x2b8] sm:$0xff]
  %v1163 = vld [vmem:[%s3 + $0x2c0] sm:$0xff]
  %v1164 = vld [vmem:[%s3 + $0x2c8] sm:$0xff]
  %v1165 = vld [vmem:[%s3 + $0x2d0] sm:$0xff]
  %v1166 = vld [vmem:[%s3 + $0x2d8] sm:$0xff]
  %v1167 = vld [vmem:[%s3 + $0x2e0] sm:$0xff]
  %v1168 = vld [vmem:[%s3 + $0x2e8] sm:$0xff]
  %v1169 = vld [vmem:[%s3 + $0x2f0] sm:$0xff]
  %v1170 = vld [vmem:[%s3 + $0x2f8] sm:$0xff]
  %v1171 = vld [vmem:[%s3 + $0x300] sm:$0xff]
  %v1172 = vld [vmem:[%s3 + $0x308] sm:$0xff]
  %v1173 = vld [vmem:[%s3 + $0x310] sm:$0xff]
  %v1174 = vld [vmem:[%s3 + $0x318] sm:$0xff]
  %v1175 = vld [vmem:[%s3 + $0x320] sm:$0xff]
  %v1176 = vld [vmem:[%s3 + $0x328] sm:$0xff]
  %v1177 = vld [vmem:[%s3 + $0x330] sm:$0xff]
  %v1178 = vld [vmem:[%s3 + $0x338] sm:$0xff]
  %v1179 = vld [vmem:[%s3 + $0x340] sm:$0xff]
  %v1180 = vld [vmem:[%s3 + $0x348] sm:$0xff]
  %v1181 = vld [vmem:[%s3 + $0x350] sm:$0xff]
  %v1182 = vld [vmem:[%s3 + $0x358] sm:$0xff]
  %v1183 = vld [vmem:[%s3 + $0x360] sm:$0xff]
  %v1184 = vld [vmem:[%s3 + $0x368] sm:$0xff]
  %v1185 = vld [vmem:[%s3 + $0x370] sm:$0xff]
  %v1186 = vld [vmem:[%s3 + $0x378] sm:$0xff]
  %v1187 = vld [vmem:[%s3 + $0x380] sm:$0xff]
  %v1188 = vld [vmem:[%s3 + $0x388] sm:$0xff]
  %v1189 = vld [vmem:[%s3 + $0x390] sm:$0xff]
  %v1190 = vld [vmem:[%s3 + $0x398] sm:$0xff]
  %v1191 = vld [vmem:[%s3 + $0x3a0] sm:$0xff]
  %v1192 = vld [vmem:[%s3 + $0x3a8] sm:$0xff]
  %v1193 = vld [vmem:[%s3 + $0x3b0] sm:$0xff]
  %v1194 = vld [vmem:[%s3 + $0x3b8] sm:$0xff]
  %v1195 = vld [vmem:[%s3 + $0x3c0] sm:$0xff]
  %v1196 = vld [vmem:[%s3 + $0x3c8] sm:$0xff]
  %v1197 = vld [vmem:[%s3 + $0x3d0] sm:$0xff]
  %v1198 = vld [vmem:[%s3 + $0x3d8] sm:$0xff]
  %v1199 = vld [vmem:[%s3 + $0x3e0] sm:$0xff]
  %v1200 = vld [vmem:[%s3 + $0x3e8] sm:$0xff]
  %v1201 = vld [vmem:[%s3 + $0x3f0] sm:$0xff]
  %v1202 = vld [vmem:[%s3 + $0x3f8] sm:$0xff]
  %v1203 = vld [vmem:[%s3 + $0x400] sm:$0xff]
  %v1204 = vld [vmem:[%s3 + $0x408] sm:$0xff]
  %v1205 = vld [vmem:[%s3 + $0x410] sm:$0xff]
  %v1206 = vld [vmem:[%s3 + $0x418] sm:$0xff]
  %v1207 = vld [vmem:[%s3 + $0x420] sm:$0xff]
  %v1208 = vld [vmem:[%s3 + $0x428] sm:$0xff]
  %v1209 = vld [vmem:[%s3 + $0x430] sm:$0xff]
  %v1210 = vld [vmem:[%s3 + $0x438] sm:$0xff]
  %v1211 = vld [vmem:[%s3 + $0x440] sm:$0xff]
  %v1212 = vld [vmem:[%s3 + $0x448] sm:$0xff]
  %v1213 = vld [vmem:[%s3 + $0x450] sm:$0xff]
  %v1214 = vld [vmem:[%s3 + $0x458] sm:$0xff]
  %v1215 = vld [vmem:[%s3 + $0x460] sm:$0xff]
  %v1216 = vld [vmem:[%s3 + $0x468] sm:$0xff]
  %v1217 = vld [vmem:[%s3 + $0x470] sm:$0xff]
  %v1218 = vld [vmem:[%s3 + $0x478] sm:$0xff]
  %v1219 = vld [vmem:[%s3 + $0x480] sm:$0xff]
  %v1220 = vld [vmem:[%s3 + $0x488] sm:$0xff]
  %v1221 = vld [vmem:[%s3 + $0x490] sm:$0xff]
  %v1222 = vld [vmem:[%s3 + $0x498] sm:$0xff]
  %v1223 = vld [vmem:[%s3 + $0x4a0] sm:$0xff]
  %v1224 = vld [vmem:[%s3 + $0x4a8] sm:$0xff]
  %v1225 = vld [vmem:[%s3 + $0x4b0] sm:$0xff]
  %v1226 = vld [vmem:[%s3 + $0x4b8] sm:$0xff]
  %v1227 = vld [vmem:[%s3 + $0x4c0] sm:$0xff]
  %v1228 = vld [vmem:[%s3 + $0x4c8] sm:$0xff]
  %v1229 = vld [vmem:[%s3 + $0x4d0] sm:$0xff]
  %v1230 = vld [vmem:[%s3 + $0x4d8] sm:$0xff]
  %v1231 = vld [vmem:[%s3 + $0x4e0] sm:$0xff]
  %v1232 = vld [vmem:[%s3 + $0x4e8] sm:$0xff]
  %v1233 = vld [vmem:[%s3 + $0x4f0] sm:$0xff]
  %v1234 = vld [vmem:[%s3 + $0x4f8] sm:$0xff]
  %v1235 = vld [vmem:[%s3 + $0x500] sm:$0xff]
  %v1236 = vld [vmem:[%s3 + $0x508] sm:$0xff]
  %v1237 = vld [vmem:[%s3 + $0x510] sm:$0xff]
  %v1238 = vld [vmem:[%s3 + $0x518] sm:$0xff]
  %v1239 = vld [vmem:[%s3 + $0x520] sm:$0xff]
  %v1240 = vld [vmem:[%s3 + $0x528] sm:$0xff]
  %v1241 = vld [vmem:[%s3 + $0x530] sm:$0xff]
  %v1242 = vld [vmem:[%s3 + $0x538] sm:$0xff]
  %v1243 = vld [vmem:[%s3 + $0x540] sm:$0xff]
  %v1244 = vld [vmem:[%s3 + $0x548] sm:$0xff]
  %v1245 = vld [vmem:[%s3 + $0x550] sm:$0xff]
  %v1246 = vld [vmem:[%s3 + $0x558] sm:$0xff]
  %v1247 = vld [vmem:[%s3 + $0x560] sm:$0xff]
  %v1248 = vld [vmem:[%s3 + $0x568] sm:$0xff]
  %v1249 = vld [vmem:[%s3 + $0x570] sm:$0xff]
  %v1250 = vld [vmem:[%s3 + $0x578] sm:$0xff]
  %v1251 = vld [vmem:[%s3 + $0x580] sm:$0xff]
  %v1252 = vld [vmem:[%s3 + $0x588] sm:$0xff]
  %v1253 = vld [vmem:[%s3 + $0x590] sm:$0xff]
  %v1254 = vld [vmem:[%s3 + $0x598] sm:$0xff]
  %v1255 = vld [vmem:[%s3 + $0x5a0] sm:$0xff]
  %v1256 = vld [vmem:[%s3 + $0x5a8] sm:$0xff]
  %v1257 = vld [vmem:[%s3 + $0x5b0] sm:$0xff]
  %v1258 = vld [vmem:[%s3 + $0x5b8] sm:$0xff]
  %v1259 = vld [vmem:[%s3 + $0x5c0] sm:$0xff]
  %v1260 = vld [vmem:[%s3 + $0x5c8] sm:$0xff]
  %v1261 = vld [vmem:[%s3 + $0x5d0] sm:$0xff]
  %v1262 = vld [vmem:[%s3 + $0x5d8] sm:$0xff]
  %v1263 = vld [vmem:[%s3 + $0x5e0] sm:$0xff]
  %v1264 = vld [vmem:[%s3 + $0x5e8] sm:$0xff]
  %v1265 = vld [vmem:[%s3 + $0x5f0] sm:$0xff]
  %v1266 = vld [vmem:[%s3 + $0x5f8] sm:$0xff]
  %v1267 = vld [vmem:[%s3 + $0x600] sm:$0xff]
  %v1268 = vld [vmem:[%s3 + $0x608] sm:$0xff]
  %v1269 = vld [vmem:[%s3 + $0x610] sm:$0xff]
  %v1270 = vld [vmem:[%s3 + $0x618] sm:$0xff]
  %v1271 = vld [vmem:[%s3 + $0x620] sm:$0xff]
  %v1272 = vld [vmem:[%s3 + $0x628] sm:$0xff]
  %v1273 = vld [vmem:[%s3 + $0x630] sm:$0xff]
  %v1274 = vld [vmem:[%s3 + $0x638] sm:$0xff]
  %v1275 = vld [vmem:[%s3 + $0x640] sm:$0xff]
  %v1276 = vld [vmem:[%s3 + $0x648] sm:$0xff]
  %v1277 = vld [vmem:[%s3 + $0x650] sm:$0xff]
  %v1278 = vld [vmem:[%s3 + $0x658] sm:$0xff]
  %v1279 = vld [vmem:[%s3 + $0x660] sm:$0xff]
  %v1280 = vld [vmem:[%s3 + $0x668] sm:$0xff]
  %v1281 = vld [vmem:[%s3 + $0x670] sm:$0xff]
  %v1282 = vld [vmem:[%s3 + $0x678] sm:$0xff]
  %v1283 = vld [vmem:[%s3 + $0x680] sm:$0xff]
  %v1284 = vld [vmem:[%s3 + $0x688] sm:$0xff]
  %v1285 = vld [vmem:[%s3 + $0x690] sm:$0xff]
  %v1286 = vld [vmem:[%s3 + $0x698] sm:$0xff]
  %v1287 = vld [vmem:[%s3 + $0x6a0] sm:$0xff]
  %v1288 = vld [vmem:[%s3 + $0x6a8] sm:$0xff]
  %v1289 = vld [vmem:[%s3 + $0x6b0] sm:$0xff]
  %v1290 = vld [vmem:[%s3 + $0x6b8] sm:$0xff]
  %v1291 = vld [vmem:[%s3 + $0x6c0] sm:$0xff]
  %v1292 = vld [vmem:[%s3 + $0x6c8] sm:$0xff]
  %v1293 = vld [vmem:[%s3 + $0x6d0] sm:$0xff]
  %v1294 = vld [vmem:[%s3 + $0x6d8] sm:$0xff]
  %v1295 = vld [vmem:[%s3 + $0x6e0] sm:$0xff]
  %v1296 = vld [vmem:[%s3 + $0x6e8] sm:$0xff]
  %v1297 = vld [vmem:[%s3 + $0x6f0] sm:$0xff]
  %v1298 = vld [vmem:[%s3 + $0x6f8] sm:$0xff]
  %v1299 = vld [vmem:[%s3 + $0x700] sm:$0xff]
  %v1300 = vld [vmem:[%s3 + $0x708] sm:$0xff]
  %v1301 = vld [vmem:[%s3 + $0x710] sm:$0xff]
  %v1302 = vld [vmem:[%s3 + $0x718] sm:$0xff]
  %v1303 = vld [vmem:[%s3 + $0x720] sm:$0xff]
  %v1304 = vld [vmem:[%s3 + $0x728] sm:$0xff]
  %v1305 = vld [vmem:[%s3 + $0x730] sm:$0xff]
  %v1306 = vld [vmem:[%s3 + $0x738] sm:$0xff]
  %v1307 = vld [vmem:[%s3 + $0x740] sm:$0xff]
  %v1308 = vld [vmem:[%s3 + $0x748] sm:$0xff]
  %v1309 = vld [vmem:[%s3 + $0x750] sm:$0xff]
  %v1310 = vld [vmem:[%s3 + $0x758] sm:$0xff]
  %v1311 = vld [vmem:[%s3 + $0x760] sm:$0xff]
  %v1312 = vld [vmem:[%s3 + $0x768] sm:$0xff]
  %v1313 = vld [vmem:[%s3 + $0x770] sm:$0xff]
  %v1314 = vld [vmem:[%s3 + $0x778] sm:$0xff]
  %v1315 = vld [vmem:[%s3 + $0x780] sm:$0xff]
  %v1316 = vld [vmem:[%s3 + $0x788] sm:$0xff]
  %v1317 = vld [vmem:[%s3 + $0x790] sm:$0xff]
  %v1318 = vld [vmem:[%s3 + $0x798] sm:$0xff]
  %v1319 = vld [vmem:[%s3 + $0x7a0] sm:$0xff]
  %v1320 = vld [vmem:[%s3 + $0x7a8] sm:$0xff]
  %v1321 = vld [vmem:[%s3 + $0x7b0] sm:$0xff]
  %v1322 = vld [vmem:[%s3 + $0x7b8] sm:$0xff]
  %v1323 = vld [vmem:[%s3 + $0x7c0] sm:$0xff]
  %v1324 = vld [vmem:[%s3 + $0x7c8] sm:$0xff]
  %v1325 = vld [vmem:[%s3 + $0x7d0] sm:$0xff]
  %v1326 = vld [vmem:[%s3 + $0x7d8] sm:$0xff]
  %v1327 = vld [vmem:[%s3 + $0x7e0] sm:$0xff]
  %v1328 = vld [vmem:[%s3 + $0x7e8] sm:$0xff]
  %v1329 = vld [vmem:[%s3 + $0x7f0] sm:$0xff]
  %v1330 = vld [vmem:[%s3 + $0x7f8] sm:$0xff]
  %v1331 = vld [vmem:[%s4] sm:$0xf]
  %v1333 = vlaneseq
  %v1334 = vshrl.u32 %v1333, 7
  %v1335 = vsub.s32 0, %v1334
  %v1336 = vrot.slane %v1331, %v1335
  %v1337 = vlaneseq
  %v1338 = vshrl.u32 %v1337, 7
  %v1339 = vsub.s32 1, %v1338
  %v1340 = vrot.slane %v1331, %v1339
  %v1341 = vlaneseq
  %v1342 = vshrl.u32 %v1341, 7
  %v1343 = vsub.s32 2, %v1342
  %v1344 = vrot.slane %v1331, %v1343
  %v1345 = vlaneseq
  %v1346 = vshrl.u32 %v1345, 7
  %v1347 = vsub.s32 3, %v1346
  %v1348 = vrot.slane %v1331, %v1347
  %1353 = vmatprep.subr.mxu0 %v1076
  %1354 = vmatpush1.msra.mxu0 %v1075
  %1355 = vmatprep.subr.mxu0 %v1080
  %1356 = vmatpush1.msra.mxu0 %v1079
  %1357 = vmatprep.subr.mxu0 %v1084
  %1358 = vmatpush1.msra.mxu0 %v1083
  %1359 = vmatprep.subr.mxu0 %v1088
  %1360 = vmatpush1.msra.mxu0 %v1087
  %1361 = vmatprep.subr.mxu0 %v1092
  %1362 = vmatpush1.msra.mxu0 %v1091
  %1363 = vmatprep.subr.mxu0 %v1096
  %1364 = vmatpush1.msra.mxu0 %v1095
  %1365 = vmatprep.subr.mxu0 %v1100
  %1366 = vmatpush1.msra.mxu0 %v1099
  %1367 = vmatprep.subr.mxu0 %v1104
  %1368 = vmatpush1.msra.mxu0 %v1103
  %1369 = vmatprep.subr.mxu0 %v1108
  %1370 = vmatpush1.msra.mxu0 %v1107
  %1371 = vmatprep.subr.mxu0 %v1112
  %1372 = vmatpush1.msra.mxu0 %v1111
  %1373 = vmatprep.subr.mxu0 %v1116
  %1374 = vmatpush1.msra.mxu0 %v1115
  %1375 = vmatprep.subr.mxu0 %v1120
  %1376 = vmatpush1.msra.mxu0 %v1119
  %1377 = vmatprep.subr.mxu0 %v1124
  %1378 = vmatpush1.msra.mxu0 %v1123
  %1379 = vmatprep.subr.mxu0 %v1128
  %1380 = vmatpush1.msra.mxu0 %v1127
  %1381 = vmatprep.subr.mxu0 %v1132
  %1382 = vmatpush1.msra.mxu0 %v1131
  %1383 = vmatprep.subr.mxu0 %v1136
  %1384 = vmatpush1.msra.mxu0 %v1135
  %1385 = vmatprep.subr.mxu0 %v1140
  %1386 = vmatpush1.msra.mxu0 %v1139
  %1387 = vmatprep.subr.mxu0 %v1144
  %1388 = vmatpush1.msra.mxu0 %v1143
  %1389 = vmatprep.subr.mxu0 %v1148
  %1390 = vmatpush1.msra.mxu0 %v1147
  %1391 = vmatprep.subr.mxu0 %v1152
  %1392 = vmatpush1.msra.mxu0 %v1151
  %1393 = vmatprep.subr.mxu0 %v1156
  %1394 = vmatpush1.msra.mxu0 %v1155
  %1395 = vmatprep.subr.mxu0 %v1160
  %1396 = vmatpush1.msra.mxu0 %v1159
  %1397 = vmatprep.subr.mxu0 %v1164
  %1398 = vmatpush1.msra.mxu0 %v1163
  %1399 = vmatprep.subr.mxu0 %v1168
  %1400 = vmatpush1.msra.mxu0 %v1167
  %1401 = vmatprep.subr.mxu0 %v1172
  %1402 = vmatpush1.msra.mxu0 %v1171
  %1403 = vmatprep.subr.mxu0 %v1176
  %1404 = vmatpush1.msra.mxu0 %v1175
  %1405 = vmatprep.subr.mxu0 %v1180
  %1406 = vmatpush1.msra.mxu0 %v1179
  %1407 = vmatprep.subr.mxu0 %v1184
  %1408 = vmatpush1.msra.mxu0 %v1183
  %1409 = vmatprep.subr.mxu0 %v1188
  %1410 = vmatpush1.msra.mxu0 %v1187
  %1411 = vmatprep.subr.mxu0 %v1192
  %1412 = vmatpush1.msra.mxu0 %v1191
  %1413 = vmatprep.subr.mxu0 %v1196
  %1414 = vmatpush1.msra.mxu0 %v1195
  %1415 = vmatprep.subr.mxu0 %v1200
  %1416 = vmatpush1.msra.mxu0 %v1199
  %1417 = vmatprep.mubr.f32.mxu0 %v1072
  %1418 = vmatmul.mubr.f32.gmra.mrb[0].mxu0 %v1071
  %v1419 = vpop.f32.mrb[0].mxu0
  %v1420 = vadd.f32 %v1336, %v1419
  %v1421 = vpop.f32.mrb[0].mxu0
  %v1422 = vadd.f32 %v1340, %v1421
  %1423 = vdwg.mxu0
  %1424 = vmatprep.subr.mxu0 %v1204
  %1425 = vmatpush1.msra.mxu0 %v1203
  %1426 = vmatprep.subr.mxu0 %v1208
  %1427 = vmatpush1.msra.mxu0 %v1207
  %1428 = vmatprep.subr.mxu0 %v1212
  %1429 = vmatpush1.msra.mxu0 %v1211
  %1430 = vmatprep.subr.mxu0 %v1216
  %1431 = vmatpush1.msra.mxu0 %v1215
  %1432 = vmatprep.subr.mxu0 %v1220
  %1433 = vmatpush1.msra.mxu0 %v1219
  %1434 = vmatprep.subr.mxu0 %v1224
  %1435 = vmatpush1.msra.mxu0 %v1223
  %1436 = vmatprep.subr.mxu0 %v1228
  %1437 = vmatpush1.msra.mxu0 %v1227
  %1438 = vmatprep.subr.mxu0 %v1232
  %1439 = vmatpush1.msra.mxu0 %v1231
  %1440 = vmatprep.subr.mxu0 %v1236
  %1441 = vmatpush1.msra.mxu0 %v1235
  %1442 = vmatprep.subr.mxu0 %v1240
  %1443 = vmatpush1.msra.mxu0 %v1239
  %1444 = vmatprep.subr.mxu0 %v1244
  %1445 = vmatpush1.msra.mxu0 %v1243
  %1446 = vmatprep.subr.mxu0 %v1248
  %1447 = vmatpush1.msra.mxu0 %v1247
  %1448 = vmatprep.subr.mxu0 %v1252
  %1449 = vmatpush1.msra.mxu0 %v1251
  %1450 = vmatprep.subr.mxu0 %v1256
  %1451 = vmatpush1.msra.mxu0 %v1255
  %1452 = vmatprep.subr.mxu0 %v1260
  %1453 = vmatpush1.msra.mxu0 %v1259
  %1454 = vmatprep.subr.mxu0 %v1264
  %1455 = vmatpush1.msra.mxu0 %v1263
  %1456 = vmatprep.subr.mxu0 %v1268
  %1457 = vmatpush1.msra.mxu0 %v1267
  %1458 = vmatprep.subr.mxu0 %v1272
  %1459 = vmatpush1.msra.mxu0 %v1271
  %1460 = vmatprep.subr.mxu0 %v1276
  %1461 = vmatpush1.msra.mxu0 %v1275
  %1462 = vmatprep.subr.mxu0 %v1280
  %1463 = vmatpush1.msra.mxu0 %v1279
  %1464 = vmatprep.subr.mxu0 %v1284
  %1465 = vmatpush1.msra.mxu0 %v1283
  %1466 = vmatprep.subr.mxu0 %v1288
  %1467 = vmatpush1.msra.mxu0 %v1287
  %1468 = vmatprep.subr.mxu0 %v1292
  %1469 = vmatpush1.msra.mxu0 %v1291
  %1470 = vmatprep.subr.mxu0 %v1296
  %1471 = vmatpush1.msra.mxu0 %v1295
  %1472 = vmatprep.subr.mxu0 %v1300
  %1473 = vmatpush1.msra.mxu0 %v1299
  %1474 = vmatprep.subr.mxu0 %v1304
  %1475 = vmatpush1.msra.mxu0 %v1303
  %1476 = vmatprep.subr.mxu0 %v1308
  %1477 = vmatpush1.msra.mxu0 %v1307
  %1478 = vmatprep.subr.mxu0 %v1312
  %1479 = vmatpush1.msra.mxu0 %v1311
  %1480 = vmatprep.subr.mxu0 %v1316
  %1481 = vmatpush1.msra.mxu0 %v1315
  %1482 = vmatprep.subr.mxu0 %v1320
  %1483 = vmatpush1.msra.mxu0 %v1319
  %1484 = vmatprep.subr.mxu0 %v1324
  %1485 = vmatpush1.msra.mxu0 %v1323
  %1486 = vmatprep.subr.mxu0 %v1328
  %1487 = vmatpush1.msra.mxu0 %v1327
  %1488 = vmatprep.mubr.f32.mxu0 %v1074
  %1489 = vmatmul.mubr.f32.gmra.mrb[0].mxu0 %v1073
  %v1490 = vpop.f32.mrb[0].mxu0
  %v1491 = vadd.f32 %v1420, %v1490
  %v1492 = vpop.f32.mrb[0].mxu0
  %v1493 = vadd.f32 %v1422, %v1492
  %1494 = vdwg.mxu0
  %1495 = vmatprep.subr.mxu0 %v1078
  %1496 = vmatpush1.msra.mxu0 %v1077
  %1497 = vmatprep.subr.mxu0 %v1082
  %1498 = vmatpush1.msra.mxu0 %v1081
  %1499 = vmatprep.subr.mxu0 %v1086
  %1500 = vmatpush1.msra.mxu0 %v1085
  %1501 = vmatprep.subr.mxu0 %v1090
  %1502 = vmatpush1.msra.mxu0 %v1089
  %1503 = vmatprep.subr.mxu0 %v1094
  %1504 = vmatpush1.msra.mxu0 %v1093
  %1505 = vmatprep.subr.mxu0 %v1098
  %1506 = vmatpush1.msra.mxu0 %v1097
  %1507 = vmatprep.subr.mxu0 %v1102
  %1508 = vmatpush1.msra.mxu0 %v1101
  %1509 = vmatprep.subr.mxu0 %v1106
  %1510 = vmatpush1.msra.mxu0 %v1105
  %1511 = vmatprep.subr.mxu0 %v1110
  %1512 = vmatpush1.msra.mxu0 %v1109
  %1513 = vmatprep.subr.mxu0 %v1114
  %1514 = vmatpush1.msra.mxu0 %v1113
  %1515 = vmatprep.subr.mxu0 %v1118
  %1516 = vmatpush1.msra.mxu0 %v1117
  %1517 = vmatprep.subr.mxu0 %v1122
  %1518 = vmatpush1.msra.mxu0 %v1121
  %1519 = vmatprep.subr.mxu0 %v1126
  %1520 = vmatpush1.msra.mxu0 %v1125
  %1521 = vmatprep.subr.mxu0 %v1130
  %1522 = vmatpush1.msra.mxu0 %v1129
  %1523 = vmatprep.subr.mxu0 %v1134
  %1524 = vmatpush1.msra.mxu0 %v1133
  %1525 = vmatprep.subr.mxu0 %v1138
  %1526 = vmatpush1.msra.mxu0 %v1137
  %1527 = vmatprep.subr.mxu0 %v1142
  %1528 = vmatpush1.msra.mxu0 %v1141
  %1529 = vmatprep.subr.mxu0 %v1146
  %1530 = vmatpush1.msra.mxu0 %v1145
  %1531 = vmatprep.subr.mxu0 %v1150
  %1532 = vmatpush1.msra.mxu0 %v1149
  %1533 = vmatprep.subr.mxu0 %v1154
  %1534 = vmatpush1.msra.mxu0 %v1153
  %1535 = vmatprep.subr.mxu0 %v1158
  %1536 = vmatpush1.msra.mxu0 %v1157
  %1537 = vmatprep.subr.mxu0 %v1162
  %1538 = vmatpush1.msra.mxu0 %v1161
  %1539 = vmatprep.subr.mxu0 %v1166
  %1540 = vmatpush1.msra.mxu0 %v1165
  %1541 = vmatprep.subr.mxu0 %v1170
  %1542 = vmatpush1.msra.mxu0 %v1169
  %1543 = vmatprep.subr.mxu0 %v1174
  %1544 = vmatpush1.msra.mxu0 %v1173
  %1545 = vmatprep.subr.mxu0 %v1178
  %1546 = vmatpush1.msra.mxu0 %v1177
  %1547 = vmatprep.subr.mxu0 %v1182
  %1548 = vmatpush1.msra.mxu0 %v1181
  %1549 = vmatprep.subr.mxu0 %v1186
  %1550 = vmatpush1.msra.mxu0 %v1185
  %1551 = vmatprep.subr.mxu0 %v1190
  %1552 = vmatpush1.msra.mxu0 %v1189
  %1553 = vmatprep.subr.mxu0 %v1194
  %1554 = vmatpush1.msra.mxu0 %v1193
  %1555 = vmatprep.subr.mxu0 %v1198
  %1556 = vmatpush1.msra.mxu0 %v1197
  %1557 = vmatprep.subr.mxu0 %v1202
  %1558 = vmatpush1.msra.mxu0 %v1201
  %1559 = vmatprep.mubr.f32.mxu0 %v1072
  %1560 = vmatmul.mubr.f32.gmra.mrb[0].mxu0 %v1071
  %v1561 = vpop.f32.mrb[0].mxu0
  %v1562 = vadd.f32 %v1344, %v1561
  %v1563 = vpop.f32.mrb[0].mxu0
  %v1564 = vadd.f32 %v1348, %v1563
  %1565 = vdwg.mxu0
  %1566 = vmatprep.subr.mxu0 %v1206
  %1567 = vmatpush1.msra.mxu0 %v1205
  %1568 = vmatprep.subr.mxu0 %v1210
  %1569 = vmatpush1.msra.mxu0 %v1209
  %1570 = vmatprep.subr.mxu0 %v1214
  %1571 = vmatpush1.msra.mxu0 %v1213
  %1572 = vmatprep.subr.mxu0 %v1218
  %1573 = vmatpush1.msra.mxu0 %v1217
  %1574 = vmatprep.subr.mxu0 %v1222
  %1575 = vmatpush1.msra.mxu0 %v1221
  %1576 = vmatprep.subr.mxu0 %v1226
  %1577 = vmatpush1.msra.mxu0 %v1225
  %1578 = vmatprep.subr.mxu0 %v1230
  %1579 = vmatpush1.msra.mxu0 %v1229
  %1580 = vmatprep.subr.mxu0 %v1234
  %1581 = vmatpush1.msra.mxu0 %v1233
  %1582 = vmatprep.subr.mxu0 %v1238
  %1583 = vmatpush1.msra.mxu0 %v1237
  %1584 = vmatprep.subr.mxu0 %v1242
  %1585 = vmatpush1.msra.mxu0 %v1241
  %1586 = vmatprep.subr.mxu0 %v1246
  %1587 = vmatpush1.msra.mxu0 %v1245
  %1588 = vmatprep.subr.mxu0 %v1250
  %1589 = vmatpush1.msra.mxu0 %v1249
  %1590 = vmatprep.subr.mxu0 %v1254
  %1591 = vmatpush1.msra.mxu0 %v1253
  %1592 = vmatprep.subr.mxu0 %v1258
  %1593 = vmatpush1.msra.mxu0 %v1257
  %1594 = vmatprep.subr.mxu0 %v1262
  %1595 = vmatpush1.msra.mxu0 %v1261
  %1596 = vmatprep.subr.mxu0 %v1266
  %1597 = vmatpush1.msra.mxu0 %v1265
  %1598 = vmatprep.subr.mxu0 %v1270
  %1599 = vmatpush1.msra.mxu0 %v1269
  %1600 = vmatprep.subr.mxu0 %v1274
  %1601 = vmatpush1.msra.mxu0 %v1273
  %1602 = vmatprep.subr.mxu0 %v1278
  %1603 = vmatpush1.msra.mxu0 %v1277
  %1604 = vmatprep.subr.mxu0 %v1282
  %1605 = vmatpush1.msra.mxu0 %v1281
  %1606 = vmatprep.subr.mxu0 %v1286
  %1607 = vmatpush1.msra.mxu0 %v1285
  %1608 = vmatprep.subr.mxu0 %v1290
  %1609 = vmatpush1.msra.mxu0 %v1289
  %1610 = vmatprep.subr.mxu0 %v1294
  %1611 = vmatpush1.msra.mxu0 %v1293
  %1612 = vmatprep.subr.mxu0 %v1298
  %1613 = vmatpush1.msra.mxu0 %v1297
  %1614 = vmatprep.subr.mxu0 %v1302
  %1615 = vmatpush1.msra.mxu0 %v1301
  %1616 = vmatprep.subr.mxu0 %v1306
  %1617 = vmatpush1.msra.mxu0 %v1305
  %1618 = vmatprep.subr.mxu0 %v1310
  %1619 = vmatpush1.msra.mxu0 %v1309
  %1620 = vmatprep.subr.mxu0 %v1314
  %1621 = vmatpush1.msra.mxu0 %v1313
  %1622 = vmatprep.subr.mxu0 %v1318
  %1623 = vmatpush1.msra.mxu0 %v1317
  %1624 = vmatprep.subr.mxu0 %v1322
  %1625 = vmatpush1.msra.mxu0 %v1321
  %1626 = vmatprep.subr.mxu0 %v1326
  %1627 = vmatpush1.msra.mxu0 %v1325
  %1628 = vmatprep.subr.mxu0 %v1330
  %1629 = vmatpush1.msra.mxu0 %v1329
  %1630 = vmatprep.mubr.f32.mxu0 %v1074
  %1631 = vmatmul.mubr.f32.gmra.mrb[0].mxu0 %v1073
  %v1632 = vpop.f32.mrb[0].mxu0
  %v1633 = vadd.f32 %v1562, %v1632
  %v1634 = vpop.f32.mrb[0].mxu0
  %v1635 = vadd.f32 %v1564, %v1634
  %1636 = vdwg.mxu0
  %v1637 = vmax.f32 %v1491, 0.0
  %v1638 = vmax.f32 %v1493, 0.0
  %v1639 = vmax.f32 %v1633, 0.0
  %v1640 = vmax.f32 %v1635, 0.0
  %v1641 = vld [vmem:[%s5] sm:$0xff]
  %v1642 = vld [vmem:[%s5 + $0x8] sm:$0xff]
  %v1643 = vld [vmem:[%s5 + $0x10] sm:$0xff]
  %v1644 = vld [vmem:[%s5 + $0x18] sm:$0xff]
  %v1645 = vld [vmem:[%s5 + $0x20] sm:$0xff]
  %v1646 = vld [vmem:[%s5 + $0x28] sm:$0xff]
  %v1647 = vld [vmem:[%s5 + $0x30] sm:$0xff]
  %v1648 = vld [vmem:[%s5 + $0x38] sm:$0xff]
  %v1649 = vld [vmem:[%s5 + $0x40] sm:$0xff]
  %v1650 = vld [vmem:[%s5 + $0x48] sm:$0xff]
  %v1651 = vld [vmem:[%s5 + $0x50] sm:$0xff]
  %v1652 = vld [vmem:[%s5 + $0x58] sm:$0xff]
  %v1653 = vld [vmem:[%s5 + $0x60] sm:$0xff]
  %v1654 = vld [vmem:[%s5 + $0x68] sm:$0xff]
  %v1655 = vld [vmem:[%s5 + $0x70] sm:$0xff]
  %v1656 = vld [vmem:[%s5 + $0x78] sm:$0xff]
  %v1657 = vld [vmem:[%s5 + $0x80] sm:$0xff]
  %v1658 = vld [vmem:[%s5 + $0x88] sm:$0xff]
  %v1659 = vld [vmem:[%s5 + $0x90] sm:$0xff]
  %v1660 = vld [vmem:[%s5 + $0x98] sm:$0xff]
  %v1661 = vld [vmem:[%s5 + $0xa0] sm:$0xff]
  %v1662 = vld [vmem:[%s5 + $0xa8] sm:$0xff]
  %v1663 = vld [vmem:[%s5 + $0xb0] sm:$0xff]
  %v1664 = vld [vmem:[%s5 + $0xb8] sm:$0xff]
  %v1665 = vld [vmem:[%s5 + $0xc0] sm:$0xff]
  %v1666 = vld [vmem:[%s5 + $0xc8] sm:$0xff]
  %v1667 = vld [vmem:[%s5 + $0xd0] sm:$0xff]
  %v1668 = vld [vmem:[%s5 + $0xd8] sm:$0xff]
  %v1669 = vld [vmem:[%s5 + $0xe0] sm:$0xff]
  %v1670 = vld [vmem:[%s5 + $0xe8] sm:$0xff]
  %v1671 = vld [vmem:[%s5 + $0xf0] sm:$0xff]
  %v1672 = vld [vmem:[%s5 + $0xf8] sm:$0xff]
  %v1673 = vld [vmem:[%s5 + $0x100] sm:$0xff]
  %v1674 = vld [vmem:[%s5 + $0x108] sm:$0xff]
  %v1675 = vld [vmem:[%s5 + $0x110] sm:$0xff]
  %v1676 = vld [vmem:[%s5 + $0x118] sm:$0xff]
  %v1677 = vld [vmem:[%s5 + $0x120] sm:$0xff]
  %v1678 = vld [vmem:[%s5 + $0x128] sm:$0xff]
  %v1679 = vld [vmem:[%s5 + $0x130] sm:$0xff]
  %v1680 = vld [vmem:[%s5 + $0x138] sm:$0xff]
  %v1681 = vld [vmem:[%s5 + $0x140] sm:$0xff]
  %v1682 = vld [vmem:[%s5 + $0x148] sm:$0xff]
  %v1683 = vld [vmem:[%s5 + $0x150] sm:$0xff]
  %v1684 = vld [vmem:[%s5 + $0x158] sm:$0xff]
  %v1685 = vld [vmem:[%s5 + $0x160] sm:$0xff]
  %v1686 = vld [vmem:[%s5 + $0x168] sm:$0xff]
  %v1687 = vld [vmem:[%s5 + $0x170] sm:$0xff]
  %v1688 = vld [vmem:[%s5 + $0x178] sm:$0xff]
  %v1689 = vld [vmem:[%s5 + $0x180] sm:$0xff]
  %v1690 = vld [vmem:[%s5 + $0x188] sm:$0xff]
  %v1691 = vld [vmem:[%s5 + $0x190] sm:$0xff]
  %v1692 = vld [vmem:[%s5 + $0x198] sm:$0xff]
  %v1693 = vld [vmem:[%s5 + $0x1a0] sm:$0xff]
  %v1694 = vld [vmem:[%s5 + $0x1a8] sm:$0xff]
  %v1695 = vld [vmem:[%s5 + $0x1b0] sm:$0xff]
  %v1696 = vld [vmem:[%s5 + $0x1b8] sm:$0xff]
  %v1697 = vld [vmem:[%s5 + $0x1c0] sm:$0xff]
  %v1698 = vld [vmem:[%s5 + $0x1c8] sm:$0xff]
  %v1699 = vld [vmem:[%s5 + $0x1d0] sm:$0xff]
  %v1700 = vld [vmem:[%s5 + $0x1d8] sm:$0xff]
  %v1701 = vld [vmem:[%s5 + $0x1e0] sm:$0xff]
  %v1702 = vld [vmem:[%s5 + $0x1e8] sm:$0xff]
  %v1703 = vld [vmem:[%s5 + $0x1f0] sm:$0xff]
  %v1704 = vld [vmem:[%s5 + $0x1f8] sm:$0xff]
  %v1705 = vld [vmem:[%s6] sm:$0x1]
  %v1707 = vlaneseq
  %v1708 = vshrl.u32 %v1707, 7
  %v1709 = vsub.s32 0, %v1708
  %v1710 = vrot.slane %v1705, %v1709
  %1712 = vmatprep.subr.mxu0 0.0
  %1713 = vmatpush1.msra.mxu0 %v1641
  %1714 = vmatprep.subr.mxu0 0.0
  %1715 = vmatpush1.msra.mxu0 %v1642
  %1716 = vmatprep.subr.mxu0 0.0
  %1717 = vmatpush1.msra.mxu0 %v1643
  %1718 = vmatprep.subr.mxu0 0.0
  %1719 = vmatpush1.msra.mxu0 %v1644
  %1720 = vmatprep.subr.mxu0 0.0
  %1721 = vmatpush1.msra.mxu0 %v1645
  %1722 = vmatprep.subr.mxu0 0.0
  %1723 = vmatpush1.msra.mxu0 %v1646
  %1724 = vmatprep.subr.mxu0 0.0
  %1725 = vmatpush1.msra.mxu0 %v1647
  %1726 = vmatprep.subr.mxu0 0.0
  %1727 = vmatpush1.msra.mxu0 %v1648
  %1728 = vmatprep.subr.mxu0 0.0
  %1729 = vmatpush1.msra.mxu0 %v1649
  %1730 = vmatprep.subr.mxu0 0.0
  %1731 = vmatpush1.msra.mxu0 %v1650
  %1732 = vmatprep.subr.mxu0 0.0
  %1733 = vmatpush1.msra.mxu0 %v1651
  %1734 = vmatprep.subr.mxu0 0.0
  %1735 = vmatpush1.msra.mxu0 %v1652
  %1736 = vmatprep.subr.mxu0 0.0
  %1737 = vmatpush1.msra.mxu0 %v1653
  %1738 = vmatprep.subr.mxu0 0.0
  %1739 = vmatpush1.msra.mxu0 %v1654
  %1740 = vmatprep.subr.mxu0 0.0
  %1741 = vmatpush1.msra.mxu0 %v1655
  %1742 = vmatprep.subr.mxu0 0.0
  %1743 = vmatpush1.msra.mxu0 %v1656
  %1744 = vmatprep.subr.mxu0 0.0
  %1745 = vmatpush1.msra.mxu0 %v1657
  %1746 = vmatprep.subr.mxu0 0.0
  %1747 = vmatpush1.msra.mxu0 %v1658
  %1748 = vmatprep.subr.mxu0 0.0
  %1749 = vmatpush1.msra.mxu0 %v1659
  %1750 = vmatprep.subr.mxu0 0.0
  %1751 = vmatpush1.msra.mxu0 %v1660
  %1752 = vmatprep.subr.mxu0 0.0
  %1753 = vmatpush1.msra.mxu0 %v1661
  %1754 = vmatprep.subr.mxu0 0.0
  %1755 = vmatpush1.msra.mxu0 %v1662
  %1756 = vmatprep.subr.mxu0 0.0
  %1757 = vmatpush1.msra.mxu0 %v1663
  %1758 = vmatprep.subr.mxu0 0.0
  %1759 = vmatpush1.msra.mxu0 %v1664
  %1760 = vmatprep.subr.mxu0 0.0
  %1761 = vmatpush1.msra.mxu0 %v1665
  %1762 = vmatprep.subr.mxu0 0.0
  %1763 = vmatpush1.msra.mxu0 %v1666
  %1764 = vmatprep.subr.mxu0 0.0
  %1765 = vmatpush1.msra.mxu0 %v1667
  %1766 = vmatprep.subr.mxu0 0.0
  %1767 = vmatpush1.msra.mxu0 %v1668
  %1768 = vmatprep.subr.mxu0 0.0
  %1769 = vmatpush1.msra.mxu0 %v1669
  %1770 = vmatprep.subr.mxu0 0.0
  %1771 = vmatpush1.msra.mxu0 %v1670
  %1772 = vmatprep.subr.mxu0 0.0
  %1773 = vmatpush1.msra.mxu0 %v1671
  %1774 = vmatprep.subr.mxu0 0.0
  %1775 = vmatpush1.msra.mxu0 %v1672
  %1776 = vmatprep.mubr.f32.mxu0 %v1638
  %1777 = vmatmul.mubr.f32.gmra.mrb[0].mxu0 %v1637
  %v1778 = vpop.f32.mrb[0].mxu0
  %v1779 = vadd.f32 %v1710, %v1778
  %v1780 = vpop.f32.mrb[0].mxu0
  %1781 = vdwg.mxu0
  %1782 = vmatprep.subr.mxu0 0.0
  %1783 = vmatpush1.msra.mxu0 %v1673
  %1784 = vmatprep.subr.mxu0 0.0
  %1785 = vmatpush1.msra.mxu0 %v1674
  %1786 = vmatprep.subr.mxu0 0.0
  %1787 = vmatpush1.msra.mxu0 %v1675
  %1788 = vmatprep.subr.mxu0 0.0
  %1789 = vmatpush1.msra.mxu0 %v1676
  %1790 = vmatprep.subr.mxu0 0.0
  %1791 = vmatpush1.msra.mxu0 %v1677
  %1792 = vmatprep.subr.mxu0 0.0
  %1793 = vmatpush1.msra.mxu0 %v1678
  %1794 = vmatprep.subr.mxu0 0.0
  %1795 = vmatpush1.msra.mxu0 %v1679
  %1796 = vmatprep.subr.mxu0 0.0
  %1797 = vmatpush1.msra.mxu0 %v1680
  %1798 = vmatprep.subr.mxu0 0.0
  %1799 = vmatpush1.msra.mxu0 %v1681
  %1800 = vmatprep.subr.mxu0 0.0
  %1801 = vmatpush1.msra.mxu0 %v1682
  %1802 = vmatprep.subr.mxu0 0.0
  %1803 = vmatpush1.msra.mxu0 %v1683
  %1804 = vmatprep.subr.mxu0 0.0
  %1805 = vmatpush1.msra.mxu0 %v1684
  %1806 = vmatprep.subr.mxu0 0.0
  %1807 = vmatpush1.msra.mxu0 %v1685
  %1808 = vmatprep.subr.mxu0 0.0
  %1809 = vmatpush1.msra.mxu0 %v1686
  %1810 = vmatprep.subr.mxu0 0.0
  %1811 = vmatpush1.msra.mxu0 %v1687
  %1812 = vmatprep.subr.mxu0 0.0
  %1813 = vmatpush1.msra.mxu0 %v1688
  %1814 = vmatprep.subr.mxu0 0.0
  %1815 = vmatpush1.msra.mxu0 %v1689
  %1816 = vmatprep.subr.mxu0 0.0
  %1817 = vmatpush1.msra.mxu0 %v1690
  %1818 = vmatprep.subr.mxu0 0.0
  %1819 = vmatpush1.msra.mxu0 %v1691
  %1820 = vmatprep.subr.mxu0 0.0
  %1821 = vmatpush1.msra.mxu0 %v1692
  %1822 = vmatprep.subr.mxu0 0.0
  %1823 = vmatpush1.msra.mxu0 %v1693
  %1824 = vmatprep.subr.mxu0 0.0
  %1825 = vmatpush1.msra.mxu0 %v1694
  %1826 = vmatprep.subr.mxu0 0.0
  %1827 = vmatpush1.msra.mxu0 %v1695
  %1828 = vmatprep.subr.mxu0 0.0
  %1829 = vmatpush1.msra.mxu0 %v1696
  %1830 = vmatprep.subr.mxu0 0.0
  %1831 = vmatpush1.msra.mxu0 %v1697
  %1832 = vmatprep.subr.mxu0 0.0
  %1833 = vmatpush1.msra.mxu0 %v1698
  %1834 = vmatprep.subr.mxu0 0.0
  %1835 = vmatpush1.msra.mxu0 %v1699
  %1836 = vmatprep.subr.mxu0 0.0
  %1837 = vmatpush1.msra.mxu0 %v1700
  %1838 = vmatprep.subr.mxu0 0.0
  %1839 = vmatpush1.msra.mxu0 %v1701
  %1840 = vmatprep.subr.mxu0 0.0
  %1841 = vmatpush1.msra.mxu0 %v1702
  %1842 = vmatprep.subr.mxu0 0.0
  %1843 = vmatpush1.msra.mxu0 %v1703
  %1844 = vmatprep.subr.mxu0 0.0
  %1845 = vmatpush1.msra.mxu0 %v1704
  %1846 = vmatprep.mubr.f32.mxu0 %v1640
  %1847 = vmatmul.mubr.f32.gmra.mrb[0].mxu0 %v1639
  %v1848 = vpop.f32.mrb[0].mxu0
  %v1849 = vadd.f32 %v1779, %v1848
  %v1850 = vpop.f32.mrb[0].mxu0
  %1851 = vdwg.mxu0
  %1852 = vst [vmem:[%s7] sm:$0xff] %v1849
  // Predicated region
  $region30: #{neural_network_forward.1} parent=0 // pred_check
    _
  $region31: #{neural_network_forward.1} parent=0 // pred_check_branch
    %1854 = sbr.rel (0) target = $region33
  $region32: #{neural_network_forward.1} parent=0 // pred_region
    _
  $region33: #{neural_network_forward.1} parent=0 // pred_fallthru
    _
  // Predicated region
  $region34: #{neural_network_forward.1} parent=0 // pred_check
    _
  $region35: #{neural_network_forward.1} parent=0 // pred_check_branch
    %1856 = sbr.rel (0) target = $region37
  $region36: #{neural_network_forward.1} parent=0 // pred_region
    _
  $region37: #{neural_network_forward.1} parent=0 // pred_fallthru
    _

</llo_original>
